<compile_context>
chip_gen: v7x
topology: tpu7x:2x2x1
jax: 0.10.0
libtpu: 0.0.40
codegen_flags: <defaults>
</compile_context>

<pallas_src>
from functools import partial

import jax
import jax.numpy as jnp
from jax.experimental import pallas as pl
from jax.experimental.pallas import tpu as pltpu

# ---- Config (from get_config() in the PyTorch module) ----
H = 128       # LSTM hidden size / target_fc out
K = 100       # fc1 out
B_F = 2       # bbox feature count (input size)
T = 6         # timeStep
K_PAD = 128   # lane-dense padding of K


def bbox_lstm_kernel(gates_ref, tgt_ref, whh_ref, wfc1h_ref, wpack_ref,
                     bpack_ref, out_ref, h_scratch):
    """gates:(T,tb,4H)  tgt:(tb,K_PAD)  whh:(H,4H)  wfc1h:(H,K_PAD)
    wpack:(K_PAD,K_PAD)  bpack:(1,K_PAD)  out:(T,tb,K_PAD)  h_scratch:(T,tb,H)."""
    tb = tgt_ref.shape[0]

    # ---- Serial recurrence: per step, one (tb,H)@(H,4H) matmul plus cell
    # elementwise ops.  h/c are loop-carried vregs; the hidden-state history
    # goes straight to VMEM scratch so vreg pressure stays flat in tb.
    # TODO(synk): on v5e/v6e whh could stay resident in the MXU across the T
    # steps via pltpu.matmul_push_rhs/matmul_acc_lhs; jnp.dot kept for portability.
    h = jnp.zeros((tb, H), jnp.float32)
    c = jnp.zeros((tb, H), jnp.float32)
    for t in range(T):
        gates = gates_ref[t] + jnp.dot(h, whh_ref[...],
                                       preferred_element_type=jnp.float32)
        i_g = jax.nn.sigmoid(gates[:, 0:H])          # PyTorch gate order i,f,g,o
        f_g = jax.nn.sigmoid(gates[:, H:2 * H])
        g_g = jnp.tanh(gates[:, 2 * H:3 * H])
        o_g = jax.nn.sigmoid(gates[:, 3 * H:4 * H])
        c = f_g * c + i_g * g_g
        h = o_g * jnp.tanh(c)
        h_scratch[t] = h

    # ---- Epilogue (off the serial critical path): batched fc1 / relu / fc2.
    h_all = h_scratch[...].reshape(T * tb, H)
    fc1 = jnp.dot(h_all, wfc1h_ref[...], preferred_element_type=jnp.float32)
    # Broadcast-add the loop-invariant target half of fc1 (bfc1 folded in);
    # padded lanes [K, 128) stay exactly zero.
    relu = jnp.maximum(fc1.reshape(T, tb, K_PAD) + tgt_ref[...][None], 0.0)
    relu2 = relu.reshape(T * tb, K_PAD)
    # fc2 outputs packed into the spare padded lanes [K, K+2): a single
    # lane-dense slab, one unmasked store, no 2-lane-wide second output.
    packed = relu2 + (jnp.dot(relu2, wpack_ref[...],
                              preferred_element_type=jnp.float32)
                      + bpack_ref[...])
    out_ref[...] = packed.reshape(T, tb, K_PAD)


def prepare_params(params):
    """One-time weight prep: pad/split fc1, fold LSTM biases, build the fc2
    'placement' matrix that writes fc2 outputs into lanes [K, K+2)."""
    wfc1_pad = jnp.pad(params["wfc1"], ((0, 0), (0, K_PAD - K)))
    bfc1_pad = jnp.pad(params["bfc1"], ((0, 0), (0, K_PAD - K)))
    wpack = jnp.zeros((K_PAD, K_PAD), jnp.float32).at[:K, K:K + 2].set(params["wfc2"])
    bpack = jnp.zeros((1, K_PAD), jnp.float32).at[:, K:K + 2].set(params["bfc2"])
    return {
        "wt": params["wt"], "bt": params["bt"],
        "wih": params["wih"],
        "b_gates": params["bih"] + params["bhh"],        # (1, 4H)
        "whh": params["whh"],
        "wfc1_h": wfc1_pad[:H, :],                       # (H, K_PAD)  h half of fc1
        "wfc1_t": wfc1_pad[H:, :],                       # (H, K_PAD)  target half of fc1
        "bfc1_pad": bfc1_pad,                            # (1, K_PAD)
        "wpack": wpack,                                  # (K_PAD, K_PAD)
        "bpack": bpack,                                  # (1, K_PAD)
    }


@partial(jax.jit, static_argnames=("block_batch",))
def bbox_lstm_forward(track, target, prepared, block_batch=None):
    """Returns (outs (B,T,2), relu_outs (B,T,K)) matching the PyTorch module."""
    B = track.shape[0]
    if block_batch is None:
        tb = B if B <= 256 else 256   # size for MXU row occupancy; VMEM never binds here
    else:
        tb = block_batch
    assert B % tb == 0, "batch must be divisible by the batch tile"
    # tb should be a multiple of 8 for clean sublane packing; tb == B with
    # B % 8 != 0 is legal but gives poorly packed sublanes.

    p = prepared
    # Layout plumbing (cheap XLA ops fused under jit): the B_F=2 contraction
    # and target branch never enter the kernel; the kernel only sees
    # lane-dense, time-major blocks.
    gates_ih = jnp.einsum("btf,fg->tbg", track, p["wih"]) + p["b_gates"]       # (T,B,4H)
    target_fc1 = (target @ p["wt"] + p["bt"]) @ p["wfc1_t"] + p["bfc1_pad"]    # (B,K_PAD)

    def _full(shape):
        return pl.BlockSpec(shape, lambda i, n=len(shape): (0,) * n)

    slab = pl.pallas_call(
        bbox_lstm_kernel,
        out_shape=jax.ShapeDtypeStruct((T, B, K_PAD), jnp.float32),
        grid=(B // tb,),
        in_specs=[
            pl.BlockSpec((T, tb, 4 * H), lambda i: (0, i, 0)),
            pl.BlockSpec((tb, K_PAD), lambda i: (i, 0)),
            _full(p["whh"].shape),
            _full(p["wfc1_h"].shape),
            _full(p["wpack"].shape),
            _full(p["bpack"].shape),
        ],
        out_specs=pl.BlockSpec((T, tb, K_PAD), lambda i: (0, i, 0)),
        scratch_shapes=[pltpu.VMEM((T, tb, H), jnp.float32)],
        compiler_params=pltpu.CompilerParams(
            dimension_semantics=("parallel",)),          # batch tiles shard across TCs
    )(gates_ih, target_fc1, p["whh"], p["wfc1_h"], p["wpack"], p["bpack"])

    outs = jnp.transpose(slab[:, :, K:K + 2], (1, 0, 2))     # (B, T, 2)
    relu_outs = jnp.transpose(slab[:, :, :K], (1, 0, 2))     # (B, T, K)
    return outs, relu_outs


def init_params(key):
    """Deterministic synthetic parameters (PyTorch-style uniform init ranges),
    stored pre-transposed as (in_features, out_features)."""
    ks = jax.random.split(key, 10)

    def unif(k, shape, fan_in):
        bound = 1.0 / jnp.sqrt(fan_in)
        return jax.random.uniform(k, shape, jnp.float32, -bound, bound)

    return {
        # target_fc: Linear(B_F, H)
        "wt":   unif(ks[0], (B_F, H), B_F),
        "bt":   unif(ks[1], (1, H), B_F),
        # LSTM: weight_ih (4H, B_F)^T -> (B_F, 4H), weight_hh (4H, H)^T -> (H, 4H)
        "wih":  unif(ks[2], (B_F, 4 * H), H),
        "bih":  unif(ks[3], (1, 4 * H), H),
        "whh":  unif(ks[4], (H, 4 * H), H),
        "bhh":  unif(ks[5], (1, 4 * H), H),
        # fc1: Linear(2H, K)
        "wfc1": unif(ks[6], (2 * H, K), 2 * H),
        "bfc1": unif(ks[7], (1, K), 2 * H),
        # fc2: Linear(K, 2)
        "wfc2": unif(ks[8], (K, 2), K),
        "bfc2": unif(ks[9], (1, 2), K),
    }


def reference_forward(track, target, p):
    """Pure-JAX reference matching the PyTorch module semantics."""
    B = track.shape[0]
    target_out = target @ p["wt"] + p["bt"][0]
    h = jnp.zeros((B, H), jnp.float32)
    c = jnp.zeros((B, H), jnp.float32)
    outs, relus = [], []
    for t in range(T):
        x = track[:, t, :]
        gates = x @ p["wih"] + p["bih"][0] + h @ p["whh"] + p["bhh"][0]
        i = jax.nn.sigmoid(gates[:, :H])
        f = jax.nn.sigmoid(gates[:, H:2 * H])
        g = jnp.tanh(gates[:, 2 * H:3 * H])
        o = jax.nn.sigmoid(gates[:, 3 * H:])
        c = f * c + i * g
        h = o * jnp.tanh(c)
        comb = jnp.concatenate([h, target_out], axis=1)
        r = jnp.maximum(comb @ p["wfc1"] + p["bfc1"][0], 0.0)
        relus.append(r)
        outs.append(r @ p["wfc2"] + p["bfc2"][0])
    return jnp.stack(outs, axis=1), jnp.stack(relus, axis=1)


if __name__ == "__main__":
    key = jax.random.PRNGKey(0)
    k_p, k_track, k_target = jax.random.split(key, 3)

    B = 16   # with tb=8 -> grid=(2,): both v7x TensorCores get work
    params = init_params(k_p)
    prepared = prepare_params(params)
    track = jax.random.normal(k_track, (B, T, B_F), jnp.float32)
    target = jax.random.normal(k_target, (B, B_F), jnp.float32)

    outs, relu_outs = bbox_lstm_forward(track, target, prepared, block_batch=8)
    outs = jax.block_until_ready(outs)
    relu_outs = jax.block_until_ready(relu_outs)

    ref_outs, ref_relu = reference_forward(track, target, params)
    assert outs.shape == (B, T, 2) and relu_outs.shape == (B, T, K)
    assert jnp.allclose(outs, ref_outs, rtol=1e-5, atol=1e-5)
    assert jnp.allclose(relu_outs, ref_relu, rtol=1e-5, atol=1e-5)

    print("KERNEL_OK")
</pallas_src>

<mosaic_0001>
module attributes {stable_mosaic.version = 11 : i64} {
  func.func @bbox_lstm_kernel(%arg0: i32, %arg1: memref<6x8x512xf32, #tpu.memory_space<vmem>>, %arg2: memref<8x128xf32, #tpu.memory_space<vmem>>, %arg3: memref<128x512xf32, #tpu.memory_space<vmem>>, %arg4: memref<128x128xf32, #tpu.memory_space<vmem>>, %arg5: memref<128x128xf32, #tpu.memory_space<vmem>>, %arg6: memref<1x128xf32, #tpu.memory_space<vmem>>, %arg7: memref<6x8x128xf32, #tpu.memory_space<vmem>>, %arg8: memref<6x8x128xf32, #tpu.memory_space<vmem>>) attributes {dimension_semantics = [#tpu.dimension_semantics<parallel>], iteration_bounds = array<i64: 2>, scalar_prefetch = 0 : i64, scratch_operands = 1 : i64, tpu.core_type = #tpu.core_type<tc>, window_params = [{transform_indices = @transform_0, window_bounds = array<i64: 6, 8, 512>}, {transform_indices = @transform_1, window_bounds = array<i64: 8, 128>}, {pipeline_mode = #tpu.pipeline_mode<synchronous>, transform_indices = @transform_2, window_bounds = array<i64: 128, 512>}, {pipeline_mode = #tpu.pipeline_mode<synchronous>, transform_indices = @transform_3, window_bounds = array<i64: 128, 128>}, {pipeline_mode = #tpu.pipeline_mode<synchronous>, transform_indices = @transform_4, window_bounds = array<i64: 128, 128>}, {pipeline_mode = #tpu.pipeline_mode<synchronous>, transform_indices = @transform_5, window_bounds = array<i64: 1, 128>}, {transform_indices = @transform_6, window_bounds = array<i64: 6, 8, 128>}]} {
    %cst = arith.constant 0.000000e+00 : f32
    %0 = vector.broadcast %cst : f32 to vector<8x128xf32>
    %cst_0 = arith.constant 0.000000e+00 : f32
    %1 = vector.broadcast %cst_0 : f32 to vector<8x128xf32>
    %c0 = arith.constant 0 : index
    %c0_1 = arith.constant 0 : index
    %c0_2 = arith.constant 0 : index
    %2 = vector.load %arg1[%c0, %c0_1, %c0_2] : memref<6x8x512xf32, #tpu.memory_space<vmem>>, vector<1x8x512xf32>
    %3 = vector.shape_cast %2 : vector<1x8x512xf32> to vector<8x512xf32>
    %c0_3 = arith.constant 0 : index
    %c0_4 = arith.constant 0 : index
    %4 = vector.load %arg3[%c0_3, %c0_4] : memref<128x512xf32, #tpu.memory_space<vmem>>, vector<128x512xf32>
    %cst_5 = arith.constant dense<0.000000e+00> : vector<8x512xf32>
    %5 = tpu.matmul %0, %4, %cst_5 {dimension_numbers = #tpu.dot_dimension_numbers<[1], [0], [0], [1], [0, 0, 1, 1], [], []>} : vector<8x128xf32>, vector<128x512xf32>, vector<8x512xf32> -> vector<8x512xf32>
    %6 = arith.addf %3, %5 : vector<8x512xf32>
    %7 = vector.extract_strided_slice %6 {offsets = [0, 0], sizes = [8, 128], strides = [1, 1]} : vector<8x512xf32> to vector<8x128xf32>
    %8 = arith.negf %7 : vector<8x128xf32>
    %9 = math.exp %8 : vector<8x128xf32>
    %cst_6 = arith.constant 1.000000e+00 : f32
    %10 = vector.broadcast %cst_6 : f32 to vector<8x128xf32>
    %11 = arith.addf %10, %9 : vector<8x128xf32>
    %12 = arith.divf %10, %11 : vector<8x128xf32>
    %13 = vector.extract_strided_slice %6 {offsets = [0, 128], sizes = [8, 128], strides = [1, 1]} : vector<8x512xf32> to vector<8x128xf32>
    %14 = arith.negf %13 : vector<8x128xf32>
    %15 = math.exp %14 : vector<8x128xf32>
    %cst_7 = arith.constant 1.000000e+00 : f32
    %16 = vector.broadcast %cst_7 : f32 to vector<8x128xf32>
    %17 = arith.addf %16, %15 : vector<8x128xf32>
    %18 = arith.divf %16, %17 : vector<8x128xf32>
    %19 = vector.extract_strided_slice %6 {offsets = [0, 256], sizes = [8, 128], strides = [1, 1]} : vector<8x512xf32> to vector<8x128xf32>
    %20 = math.tanh %19 : vector<8x128xf32>
    %21 = vector.extract_strided_slice %6 {offsets = [0, 384], sizes = [8, 128], strides = [1, 1]} : vector<8x512xf32> to vector<8x128xf32>
    %22 = arith.negf %21 : vector<8x128xf32>
    %23 = math.exp %22 : vector<8x128xf32>
    %cst_8 = arith.constant 1.000000e+00 : f32
    %24 = vector.broadcast %cst_8 : f32 to vector<8x128xf32>
    %25 = arith.addf %24, %23 : vector<8x128xf32>
    %26 = arith.divf %24, %25 : vector<8x128xf32>
    %27 = arith.mulf %18, %1 : vector<8x128xf32>
    %28 = arith.mulf %12, %20 : vector<8x128xf32>
    %29 = arith.addf %27, %28 : vector<8x128xf32>
    %30 = math.tanh %29 : vector<8x128xf32>
    %31 = arith.mulf %26, %30 : vector<8x128xf32>
    %c0_9 = arith.constant 0 : index
    %c0_10 = arith.constant 0 : index
    %c0_11 = arith.constant 0 : index
    %32 = vector.load %arg8[%c0_9, %c0_10, %c0_11] : memref<6x8x128xf32, #tpu.memory_space<vmem>>, vector<1x8x128xf32>
    %33 = vector.shape_cast %32 : vector<1x8x128xf32> to vector<8x128xf32>
    %34 = vector.shape_cast %31 : vector<8x128xf32> to vector<1x8x128xf32>
    tpu.vector_store %arg8[%c0_9, %c0_10, %c0_11], %34 {strides = array<i32>} : memref<6x8x128xf32, #tpu.memory_space<vmem>>, vector<1x8x128xf32>,
    %c1 = arith.constant 1 : index
    %c0_12 = arith.constant 0 : index
    %c0_13 = arith.constant 0 : index
    %35 = vector.load %arg1[%c1, %c0_12, %c0_13] : memref<6x8x512xf32, #tpu.memory_space<vmem>>, vector<1x8x512xf32>
    %36 = vector.shape_cast %35 : vector<1x8x512xf32> to vector<8x512xf32>
    %c0_14 = arith.constant 0 : index
    %c0_15 = arith.constant 0 : index
    %37 = vector.load %arg3[%c0_14, %c0_15] : memref<128x512xf32, #tpu.memory_space<vmem>>, vector<128x512xf32>
    %cst_16 = arith.constant dense<0.000000e+00> : vector<8x512xf32>
    %38 = tpu.matmul %31, %37, %cst_16 {dimension_numbers = #tpu.dot_dimension_numbers<[1], [0], [0], [1], [0, 0, 1, 1], [], []>} : vector<8x128xf32>, vector<128x512xf32>, vector<8x512xf32> -> vector<8x512xf32>
    %39 = arith.addf %36, %38 : vector<8x512xf32>
    %40 = vector.extract_strided_slice %39 {offsets = [0, 0], sizes = [8, 128], strides = [1, 1]} : vector<8x512xf32> to vector<8x128xf32>
    %41 = arith.negf %40 : vector<8x128xf32>
    %42 = math.exp %41 : vector<8x128xf32>
    %cst_17 = arith.constant 1.000000e+00 : f32
    %43 = vector.broadcast %cst_17 : f32 to vector<8x128xf32>
    %44 = arith.addf %43, %42 : vector<8x128xf32>
    %45 = arith.divf %43, %44 : vector<8x128xf32>
    %46 = vector.extract_strided_slice %39 {offsets = [0, 128], sizes = [8, 128], strides = [1, 1]} : vector<8x512xf32> to vector<8x128xf32>
    %47 = arith.negf %46 : vector<8x128xf32>
    %48 = math.exp %47 : vector<8x128xf32>
    %cst_18 = arith.constant 1.000000e+00 : f32
    %49 = vector.broadcast %cst_18 : f32 to vector<8x128xf32>
    %50 = arith.addf %49, %48 : vector<8x128xf32>
    %51 = arith.divf %49, %50 : vector<8x128xf32>
    %52 = vector.extract_strided_slice %39 {offsets = [0, 256], sizes = [8, 128], strides = [1, 1]} : vector<8x512xf32> to vector<8x128xf32>
    %53 = math.tanh %52 : vector<8x128xf32>
    %54 = vector.extract_strided_slice %39 {offsets = [0, 384], sizes = [8, 128], strides = [1, 1]} : vector<8x512xf32> to vector<8x128xf32>
    %55 = arith.negf %54 : vector<8x128xf32>
    %56 = math.exp %55 : vector<8x128xf32>
    %cst_19 = arith.constant 1.000000e+00 : f32
    %57 = vector.broadcast %cst_19 : f32 to vector<8x128xf32>
    %58 = arith.addf %57, %56 : vector<8x128xf32>
    %59 = arith.divf %57, %58 : vector<8x128xf32>
    %60 = arith.mulf %51, %29 : vector<8x128xf32>
    %61 = arith.mulf %45, %53 : vector<8x128xf32>
    %62 = arith.addf %60, %61 : vector<8x128xf32>
    %63 = math.tanh %62 : vector<8x128xf32>
    %64 = arith.mulf %59, %63 : vector<8x128xf32>
    %c1_20 = arith.constant 1 : index
    %c0_21 = arith.constant 0 : index
    %c0_22 = arith.constant 0 : index
    %65 = vector.load %arg8[%c1_20, %c0_21, %c0_22] : memref<6x8x128xf32, #tpu.memory_space<vmem>>, vector<1x8x128xf32>
    %66 = vector.shape_cast %65 : vector<1x8x128xf32> to vector<8x128xf32>
    %67 = vector.shape_cast %64 : vector<8x128xf32> to vector<1x8x128xf32>
    tpu.vector_store %arg8[%c1_20, %c0_21, %c0_22], %67 {strides = array<i32>} : memref<6x8x128xf32, #tpu.memory_space<vmem>>, vector<1x8x128xf32>,
    %c2 = arith.constant 2 : index
    %c0_23 = arith.constant 0 : index
    %c0_24 = arith.constant 0 : index
    %68 = vector.load %arg1[%c2, %c0_23, %c0_24] : memref<6x8x512xf32, #tpu.memory_space<vmem>>, vector<1x8x512xf32>
    %69 = vector.shape_cast %68 : vector<1x8x512xf32> to vector<8x512xf32>
    %c0_25 = arith.constant 0 : index
    %c0_26 = arith.constant 0 : index
    %70 = vector.load %arg3[%c0_25, %c0_26] : memref<128x512xf32, #tpu.memory_space<vmem>>, vector<128x512xf32>
    %cst_27 = arith.constant dense<0.000000e+00> : vector<8x512xf32>
    %71 = tpu.matmul %64, %70, %cst_27 {dimension_numbers = #tpu.dot_dimension_numbers<[1], [0], [0], [1], [0, 0, 1, 1], [], []>} : vector<8x128xf32>, vector<128x512xf32>, vector<8x512xf32> -> vector<8x512xf32>
    %72 = arith.addf %69, %71 : vector<8x512xf32>
    %73 = vector.extract_strided_slice %72 {offsets = [0, 0], sizes = [8, 128], strides = [1, 1]} : vector<8x512xf32> to vector<8x128xf32>
    %74 = arith.negf %73 : vector<8x128xf32>
    %75 = math.exp %74 : vector<8x128xf32>
    %cst_28 = arith.constant 1.000000e+00 : f32
    %76 = vector.broadcast %cst_28 : f32 to vector<8x128xf32>
    %77 = arith.addf %76, %75 : vector<8x128xf32>
    %78 = arith.divf %76, %77 : vector<8x128xf32>
    %79 = vector.extract_strided_slice %72 {offsets = [0, 128], sizes = [8, 128], strides = [1, 1]} : vector<8x512xf32> to vector<8x128xf32>
    %80 = arith.negf %79 : vector<8x128xf32>
    %81 = math.exp %80 : vector<8x128xf32>
    %cst_29 = arith.constant 1.000000e+00 : f32
    %82 = vector.broadcast %cst_29 : f32 to vector<8x128xf32>
    %83 = arith.addf %82, %81 : vector<8x128xf32>
    %84 = arith.divf %82, %83 : vector<8x128xf32>
    %85 = vector.extract_strided_slice %72 {offsets = [0, 256], sizes = [8, 128], strides = [1, 1]} : vector<8x512xf32> to vector<8x128xf32>
    %86 = math.tanh %85 : vector<8x128xf32>
    %87 = vector.extract_strided_slice %72 {offsets = [0, 384], sizes = [8, 128], strides = [1, 1]} : vector<8x512xf32> to vector<8x128xf32>
    %88 = arith.negf %87 : vector<8x128xf32>
    %89 = math.exp %88 : vector<8x128xf32>
    %cst_30 = arith.constant 1.000000e+00 : f32
    %90 = vector.broadcast %cst_30 : f32 to vector<8x128xf32>
    %91 = arith.addf %90, %89 : vector<8x128xf32>
    %92 = arith.divf %90, %91 : vector<8x128xf32>
    %93 = arith.mulf %84, %62 : vector<8x128xf32>
    %94 = arith.mulf %78, %86 : vector<8x128xf32>
    %95 = arith.addf %93, %94 : vector<8x128xf32>
    %96 = math.tanh %95 : vector<8x128xf32>
    %97 = arith.mulf %92, %96 : vector<8x128xf32>
    %c2_31 = arith.constant 2 : index
    %c0_32 = arith.constant 0 : index
    %c0_33 = arith.constant 0 : index
    %98 = vector.load %arg8[%c2_31, %c0_32, %c0_33] : memref<6x8x128xf32, #tpu.memory_space<vmem>>, vector<1x8x128xf32>
    %99 = vector.shape_cast %98 : vector<1x8x128xf32> to vector<8x128xf32>
    %100 = vector.shape_cast %97 : vector<8x128xf32> to vector<1x8x128xf32>
    tpu.vector_store %arg8[%c2_31, %c0_32, %c0_33], %100 {strides = array<i32>} : memref<6x8x128xf32, #tpu.memory_space<vmem>>, vector<1x8x128xf32>,
    %c3 = arith.constant 3 : index
    %c0_34 = arith.constant 0 : index
    %c0_35 = arith.constant 0 : index
    %101 = vector.load %arg1[%c3, %c0_34, %c0_35] : memref<6x8x512xf32, #tpu.memory_space<vmem>>, vector<1x8x512xf32>
    %102 = vector.shape_cast %101 : vector<1x8x512xf32> to vector<8x512xf32>
    %c0_36 = arith.constant 0 : index
    %c0_37 = arith.constant 0 : index
    %103 = vector.load %arg3[%c0_36, %c0_37] : memref<128x512xf32, #tpu.memory_space<vmem>>, vector<128x512xf32>
    %cst_38 = arith.constant dense<0.000000e+00> : vector<8x512xf32>
    %104 = tpu.matmul %97, %103, %cst_38 {dimension_numbers = #tpu.dot_dimension_numbers<[1], [0], [0], [1], [0, 0, 1, 1], [], []>} : vector<8x128xf32>, vector<128x512xf32>, vector<8x512xf32> -> vector<8x512xf32>
    %105 = arith.addf %102, %104 : vector<8x512xf32>
    %106 = vector.extract_strided_slice %105 {offsets = [0, 0], sizes = [8, 128], strides = [1, 1]} : vector<8x512xf32> to vector<8x128xf32>
    %107 = arith.negf %106 : vector<8x128xf32>
    %108 = math.exp %107 : vector<8x128xf32>
    %cst_39 = arith.constant 1.000000e+00 : f32
    %109 = vector.broadcast %cst_39 : f32 to vector<8x128xf32>
    %110 = arith.addf %109, %108 : vector<8x128xf32>
    %111 = arith.divf %109, %110 : vector<8x128xf32>
    %112 = vector.extract_strided_slice %105 {offsets = [0, 128], sizes = [8, 128], strides = [1, 1]} : vector<8x512xf32> to vector<8x128xf32>
    %113 = arith.negf %112 : vector<8x128xf32>
    %114 = math.exp %113 : vector<8x128xf32>
    %cst_40 = arith.constant 1.000000e+00 : f32
    %115 = vector.broadcast %cst_40 : f32 to vector<8x128xf32>
    %116 = arith.addf %115, %114 : vector<8x128xf32>
    %117 = arith.divf %115, %116 : vector<8x128xf32>
    %118 = vector.extract_strided_slice %105 {offsets = [0, 256], sizes = [8, 128], strides = [1, 1]} : vector<8x512xf32> to vector<8x128xf32>
    %119 = math.tanh %118 : vector<8x128xf32>
    %120 = vector.extract_strided_slice %105 {offsets = [0, 384], sizes = [8, 128], strides = [1, 1]} : vector<8x512xf32> to vector<8x128xf32>
    %121 = arith.negf %120 : vector<8x128xf32>
    %122 = math.exp %121 : vector<8x128xf32>
    %cst_41 = arith.constant 1.000000e+00 : f32
    %123 = vector.broadcast %cst_41 : f32 to vector<8x128xf32>
    %124 = arith.addf %123, %122 : vector<8x128xf32>
    %125 = arith.divf %123, %124 : vector<8x128xf32>
    %126 = arith.mulf %117, %95 : vector<8x128xf32>
    %127 = arith.mulf %111, %119 : vector<8x128xf32>
    %128 = arith.addf %126, %127 : vector<8x128xf32>
    %129 = math.tanh %128 : vector<8x128xf32>
    %130 = arith.mulf %125, %129 : vector<8x128xf32>
    %c3_42 = arith.constant 3 : index
    %c0_43 = arith.constant 0 : index
    %c0_44 = arith.constant 0 : index
    %131 = vector.load %arg8[%c3_42, %c0_43, %c0_44] : memref<6x8x128xf32, #tpu.memory_space<vmem>>, vector<1x8x128xf32>
    %132 = vector.shape_cast %131 : vector<1x8x128xf32> to vector<8x128xf32>
    %133 = vector.shape_cast %130 : vector<8x128xf32> to vector<1x8x128xf32>
    tpu.vector_store %arg8[%c3_42, %c0_43, %c0_44], %133 {strides = array<i32>} : memref<6x8x128xf32, #tpu.memory_space<vmem>>, vector<1x8x128xf32>,
    %c4 = arith.constant 4 : index
    %c0_45 = arith.constant 0 : index
    %c0_46 = arith.constant 0 : index
    %134 = vector.load %arg1[%c4, %c0_45, %c0_46] : memref<6x8x512xf32, #tpu.memory_space<vmem>>, vector<1x8x512xf32>
    %135 = vector.shape_cast %134 : vector<1x8x512xf32> to vector<8x512xf32>
    %c0_47 = arith.constant 0 : index
    %c0_48 = arith.constant 0 : index
    %136 = vector.load %arg3[%c0_47, %c0_48] : memref<128x512xf32, #tpu.memory_space<vmem>>, vector<128x512xf32>
    %cst_49 = arith.constant dense<0.000000e+00> : vector<8x512xf32>
    %137 = tpu.matmul %130, %136, %cst_49 {dimension_numbers = #tpu.dot_dimension_numbers<[1], [0], [0], [1], [0, 0, 1, 1], [], []>} : vector<8x128xf32>, vector<128x512xf32>, vector<8x512xf32> -> vector<8x512xf32>
    %138 = arith.addf %135, %137 : vector<8x512xf32>
    %139 = vector.extract_strided_slice %138 {offsets = [0, 0], sizes = [8, 128], strides = [1, 1]} : vector<8x512xf32> to vector<8x128xf32>
    %140 = arith.negf %139 : vector<8x128xf32>
    %141 = math.exp %140 : vector<8x128xf32>
    %cst_50 = arith.constant 1.000000e+00 : f32
    %142 = vector.broadcast %cst_50 : f32 to vector<8x128xf32>
    %143 = arith.addf %142, %141 : vector<8x128xf32>
    %144 = arith.divf %142, %143 : vector<8x128xf32>
    %145 = vector.extract_strided_slice %138 {offsets = [0, 128], sizes = [8, 128], strides = [1, 1]} : vector<8x512xf32> to vector<8x128xf32>
    %146 = arith.negf %145 : vector<8x128xf32>
    %147 = math.exp %146 : vector<8x128xf32>
    %cst_51 = arith.constant 1.000000e+00 : f32
    %148 = vector.broadcast %cst_51 : f32 to vector<8x128xf32>
    %149 = arith.addf %148, %147 : vector<8x128xf32>
    %150 = arith.divf %148, %149 : vector<8x128xf32>
    %151 = vector.extract_strided_slice %138 {offsets = [0, 256], sizes = [8, 128], strides = [1, 1]} : vector<8x512xf32> to vector<8x128xf32>
    %152 = math.tanh %151 : vector<8x128xf32>
    %153 = vector.extract_strided_slice %138 {offsets = [0, 384], sizes = [8, 128], strides = [1, 1]} : vector<8x512xf32> to vector<8x128xf32>
    %154 = arith.negf %153 : vector<8x128xf32>
    %155 = math.exp %154 : vector<8x128xf32>
    %cst_52 = arith.constant 1.000000e+00 : f32
    %156 = vector.broadcast %cst_52 : f32 to vector<8x128xf32>
    %157 = arith.addf %156, %155 : vector<8x128xf32>
    %158 = arith.divf %156, %157 : vector<8x128xf32>
    %159 = arith.mulf %150, %128 : vector<8x128xf32>
    %160 = arith.mulf %144, %152 : vector<8x128xf32>
    %161 = arith.addf %159, %160 : vector<8x128xf32>
    %162 = math.tanh %161 : vector<8x128xf32>
    %163 = arith.mulf %158, %162 : vector<8x128xf32>
    %c4_53 = arith.constant 4 : index
    %c0_54 = arith.constant 0 : index
    %c0_55 = arith.constant 0 : index
    %164 = vector.load %arg8[%c4_53, %c0_54, %c0_55] : memref<6x8x128xf32, #tpu.memory_space<vmem>>, vector<1x8x128xf32>
    %165 = vector.shape_cast %164 : vector<1x8x128xf32> to vector<8x128xf32>
    %166 = vector.shape_cast %163 : vector<8x128xf32> to vector<1x8x128xf32>
    tpu.vector_store %arg8[%c4_53, %c0_54, %c0_55], %166 {strides = array<i32>} : memref<6x8x128xf32, #tpu.memory_space<vmem>>, vector<1x8x128xf32>,
    %c5 = arith.constant 5 : index
    %c0_56 = arith.constant 0 : index
    %c0_57 = arith.constant 0 : index
    %167 = vector.load %arg1[%c5, %c0_56, %c0_57] : memref<6x8x512xf32, #tpu.memory_space<vmem>>, vector<1x8x512xf32>
    %168 = vector.shape_cast %167 : vector<1x8x512xf32> to vector<8x512xf32>
    %c0_58 = arith.constant 0 : index
    %c0_59 = arith.constant 0 : index
    %169 = vector.load %arg3[%c0_58, %c0_59] : memref<128x512xf32, #tpu.memory_space<vmem>>, vector<128x512xf32>
    %cst_60 = arith.constant dense<0.000000e+00> : vector<8x512xf32>
    %170 = tpu.matmul %163, %169, %cst_60 {dimension_numbers = #tpu.dot_dimension_numbers<[1], [0], [0], [1], [0, 0, 1, 1], [], []>} : vector<8x128xf32>, vector<128x512xf32>, vector<8x512xf32> -> vector<8x512xf32>
    %171 = arith.addf %168, %170 : vector<8x512xf32>
    %172 = vector.extract_strided_slice %171 {offsets = [0, 0], sizes = [8, 128], strides = [1, 1]} : vector<8x512xf32> to vector<8x128xf32>
    %173 = arith.negf %172 : vector<8x128xf32>
    %174 = math.exp %173 : vector<8x128xf32>
    %cst_61 = arith.constant 1.000000e+00 : f32
    %175 = vector.broadcast %cst_61 : f32 to vector<8x128xf32>
    %176 = arith.addf %175, %174 : vector<8x128xf32>
    %177 = arith.divf %175, %176 : vector<8x128xf32>
    %178 = vector.extract_strided_slice %171 {offsets = [0, 128], sizes = [8, 128], strides = [1, 1]} : vector<8x512xf32> to vector<8x128xf32>
    %179 = arith.negf %178 : vector<8x128xf32>
    %180 = math.exp %179 : vector<8x128xf32>
    %cst_62 = arith.constant 1.000000e+00 : f32
    %181 = vector.broadcast %cst_62 : f32 to vector<8x128xf32>
    %182 = arith.addf %181, %180 : vector<8x128xf32>
    %183 = arith.divf %181, %182 : vector<8x128xf32>
    %184 = vector.extract_strided_slice %171 {offsets = [0, 256], sizes = [8, 128], strides = [1, 1]} : vector<8x512xf32> to vector<8x128xf32>
    %185 = math.tanh %184 : vector<8x128xf32>
    %186 = vector.extract_strided_slice %171 {offsets = [0, 384], sizes = [8, 128], strides = [1, 1]} : vector<8x512xf32> to vector<8x128xf32>
    %187 = arith.negf %186 : vector<8x128xf32>
    %188 = math.exp %187 : vector<8x128xf32>
    %cst_63 = arith.constant 1.000000e+00 : f32
    %189 = vector.broadcast %cst_63 : f32 to vector<8x128xf32>
    %190 = arith.addf %189, %188 : vector<8x128xf32>
    %191 = arith.divf %189, %190 : vector<8x128xf32>
    %192 = arith.mulf %183, %161 : vector<8x128xf32>
    %193 = arith.mulf %177, %185 : vector<8x128xf32>
    %194 = arith.addf %192, %193 : vector<8x128xf32>
    %195 = math.tanh %194 : vector<8x128xf32>
    %196 = arith.mulf %191, %195 : vector<8x128xf32>
    %c5_64 = arith.constant 5 : index
    %c0_65 = arith.constant 0 : index
    %c0_66 = arith.constant 0 : index
    %197 = vector.load %arg8[%c5_64, %c0_65, %c0_66] : memref<6x8x128xf32, #tpu.memory_space<vmem>>, vector<1x8x128xf32>
    %198 = vector.shape_cast %197 : vector<1x8x128xf32> to vector<8x128xf32>
    %199 = vector.shape_cast %196 : vector<8x128xf32> to vector<1x8x128xf32>
    tpu.vector_store %arg8[%c5_64, %c0_65, %c0_66], %199 {strides = array<i32>} : memref<6x8x128xf32, #tpu.memory_space<vmem>>, vector<1x8x128xf32>,
    %c0_67 = arith.constant 0 : index
    %c0_68 = arith.constant 0 : index
    %c0_69 = arith.constant 0 : index
    %200 = vector.load %arg8[%c0_67, %c0_68, %c0_69] : memref<6x8x128xf32, #tpu.memory_space<vmem>>, vector<6x8x128xf32>
    %201 = vector.shape_cast %200 : vector<6x8x128xf32> to vector<48x128xf32>
    %c0_70 = arith.constant 0 : index
    %c0_71 = arith.constant 0 : index
    %202 = vector.load %arg4[%c0_70, %c0_71] : memref<128x128xf32, #tpu.memory_space<vmem>>, vector<128x128xf32>
    %cst_72 = arith.constant dense<0.000000e+00> : vector<48x128xf32>
    %203 = tpu.matmul %201, %202, %cst_72 {dimension_numbers = #tpu.dot_dimension_numbers<[1], [0], [0], [1], [0, 0, 1, 1], [], []>} : vector<48x128xf32>, vector<128x128xf32>, vector<48x128xf32> -> vector<48x128xf32>
    %204 = vector.shape_cast %203 : vector<48x128xf32> to vector<6x8x128xf32>
    %c0_73 = arith.constant 0 : index
    %c0_74 = arith.constant 0 : index
    %205 = vector.load %arg2[%c0_73, %c0_74] : memref<8x128xf32, #tpu.memory_space<vmem>>, vector<8x128xf32>
    %206 = vector.shape_cast %205 : vector<8x128xf32> to vector<1x8x128xf32>
    %207 = vector.broadcast %206 : vector<1x8x128xf32> to vector<6x8x128xf32>
    %208 = arith.addf %204, %207 : vector<6x8x128xf32>
    %cst_75 = arith.constant 0.000000e+00 : f32
    %209 = vector.broadcast %cst_75 : f32 to vector<6x8x128xf32>
    %210 = arith.maximumf %208, %209 : vector<6x8x128xf32>
    %211 = vector.shape_cast %210 : vector<6x8x128xf32> to vector<48x128xf32>
    %c0_76 = arith.constant 0 : index
    %c0_77 = arith.constant 0 : index
    %212 = vector.load %arg5[%c0_76, %c0_77] : memref<128x128xf32, #tpu.memory_space<vmem>>, vector<128x128xf32>
    %cst_78 = arith.constant dense<0.000000e+00> : vector<48x128xf32>
    %213 = tpu.matmul %211, %212, %cst_78 {dimension_numbers = #tpu.dot_dimension_numbers<[1], [0], [0], [1], [0, 0, 1, 1], [], []>} : vector<48x128xf32>, vector<128x128xf32>, vector<48x128xf32> -> vector<48x128xf32>
    %c0_79 = arith.constant 0 : index
    %c0_80 = arith.constant 0 : index
    %214 = vector.load %arg6[%c0_79, %c0_80] : memref<1x128xf32, #tpu.memory_space<vmem>>, vector<1x128xf32>
    %215 = vector.broadcast %214 : vector<1x128xf32> to vector<48x128xf32>
    %216 = arith.addf %213, %215 : vector<48x128xf32>
    %217 = arith.addf %211, %216 : vector<48x128xf32>
    %218 = vector.shape_cast %217 : vector<48x128xf32> to vector<6x8x128xf32>
    %c0_81 = arith.constant 0 : index
    %c0_82 = arith.constant 0 : index
    %c0_83 = arith.constant 0 : index
    %219 = vector.load %arg7[%c0_81, %c0_82, %c0_83] : memref<6x8x128xf32, #tpu.memory_space<vmem>>, vector<6x8x128xf32>
    tpu.vector_store %arg7[%c0_81, %c0_82, %c0_83], %218 {strides = array<i32>} : memref<6x8x128xf32, #tpu.memory_space<vmem>>, vector<6x8x128xf32>,
    return
  }
  func.func @transform_0(%arg0: i32) -> (i32, i32, i32) {
    %c0_i32 = arith.constant 0 : i32
    %c0_i32_0 = arith.constant 0 : i32
    %c0_i32_1 = arith.constant 0 : i32
    return %c0_i32, %arg0, %c0_i32_0 : i32, i32, i32
  }
  func.func @transform_1(%arg0: i32) -> (i32, i32) {
    %c0_i32 = arith.constant 0 : i32
    %c0_i32_0 = arith.constant 0 : i32
    return %arg0, %c0_i32 : i32, i32
  }
  func.func @transform_2(%arg0: i32) -> (i32, i32) {
    %c0_i32 = arith.constant 0 : i32
    %c0_i32_0 = arith.constant 0 : i32
    %c0_i32_1 = arith.constant 0 : i32
    return %c0_i32, %c0_i32_0 : i32, i32
  }
  func.func @transform_3(%arg0: i32) -> (i32, i32) {
    %c0_i32 = arith.constant 0 : i32
    %c0_i32_0 = arith.constant 0 : i32
    %c0_i32_1 = arith.constant 0 : i32
    return %c0_i32, %c0_i32_0 : i32, i32
  }
  func.func @transform_4(%arg0: i32) -> (i32, i32) {
    %c0_i32 = arith.constant 0 : i32
    %c0_i32_0 = arith.constant 0 : i32
    %c0_i32_1 = arith.constant 0 : i32
    return %c0_i32, %c0_i32_0 : i32, i32
  }
  func.func @transform_5(%arg0: i32) -> (i32, i32) {
    %c0_i32 = arith.constant 0 : i32
    %c0_i32_0 = arith.constant 0 : i32
    %c0_i32_1 = arith.constant 0 : i32
    return %c0_i32, %c0_i32_0 : i32, i32
  }
  func.func @transform_6(%arg0: i32) -> (i32, i32, i32) {
    %c0_i32 = arith.constant 0 : i32
    %c0_i32_0 = arith.constant 0 : i32
    %c0_i32_1 = arith.constant 0 : i32
    return %c0_i32, %arg0, %c0_i32_0 : i32, i32, i32
  }
}

</mosaic_0001>

<llo_original>
// kernel: bbox_lstm_forward.1
$region0: #{bbox_lstm_forward.1}
  #allocation0 [shape = 'u32[]', space=smem, size = 0x4, offset = 0x4, fixed_abs, tag = 'smem constant byte address 0x4 - core index']
  #allocation1 [shape = 'u32[144,128]{1,0:T(1,128)}', space=vmem, size = 0x12000, scoped, tag = 'internal scratch']
  #allocation2 [shape = 'f32[6,8,128]{2,1,0:T(8,128)}', space=vmem, size = 0x6000, scoped, tag = 'scratch operand']
  %s0 = inlined_call_operand.vmem [shape: f32[6,16,512], index: 0, kind: input, shape index: {}]
  %s1 = inlined_call_operand.vmem [shape: f32[16,128], index: 1, kind: input, shape index: {}]
  %s2 = inlined_call_operand.vmem [shape: f32[128,512], index: 2, kind: input, shape index: {}]
  %s3 = inlined_call_operand.hbm [shape: f32[128,128], index: 3, kind: input, shape index: {}]
  %s4 = inlined_call_operand.hbm [shape: f32[128,128], index: 4, kind: input, shape index: {}]
  %s5 = inlined_call_operand.vmem [shape: f32[1,128], index: 5, kind: input, shape index: {}]
  %s6 = inlined_call_operand.vmem [shape: f32[6,16,128], index: 6, kind: output, shape index: {}]
  %s7 = sld [smem:[#allocation0]]
  $region122: #{bbox_lstm_forward.1} parent=0
    _
  %s9 = ssub.s32 1, %s7
  %s10 = scalar_select 0, %s9, %s7
  $region1: #{bbox_lstm_forward.1} parent=0
    #allocation3 [shape = 'u8[196608]{0}', space=vmem, size = 0x30000, scoped, tag = 'input window, operand 0']
    #allocation4 [shape = 'u8[65536]{0}', space=vmem, size = 0x10000, scoped, tag = 'input window, operand 3, single buffered']
    #allocation5 [shape = 's32[2]{0}', space=sflag, size = 0x8, scoped, tag = 'scoped memory for bbox_lstm_forward.1']
    #allocation6 [shape = 'u8[65536]{0}', space=vmem, size = 0x10000, scoped, tag = 'input window, operand 4, single buffered']
    #allocation7 [shape = 's32[1]{0}', space=sflag, size = 0x4, scoped, tag = 'scoped memory for bbox_lstm_forward.1']
    #allocation8 [shape = 'u8[49152]{0}', space=vmem, size = 0xc000, scoped, tag = 'output window, operand 0']
    %11 = vsyncpa [#allocation5], 0
    %12 = vsyncpa [#allocation7], 0
    loop: start=0, step=1, limit=4
    $region2: #{bbox_lstm_forward.1} parent=1 // loop_pre_header
      _
    $region3: #{bbox_lstm_forward.1} parent=1 // loop_header
      %s14 = sphi 0, %s18
      %p15 = scmp.ge.s32.totalorder %s14, 4
      %s24 = sphi 0, %s26
      %s27 = sphi 0, %s24
      %s28 = sphi 0, %s27
      %s44 = sphi 0, %s28
      %s50 = sphi 0, %s52
      %s53 = sphi 0, %s50
      %s54 = sphi 0, %s53
      %s70 = sphi 0, %s54
      %s74 = sphi 0, %s74
      %s76 = sphi 0, %s74
      %s77 = sphi 0, %s76
      %s91 = sphi 0, %s77
      %s95 = sphi 0, %s95
      %s97 = sphi 0, %s95
      %s98 = sphi 0, %s97
      %s112 = sphi 0, %s98
      %s116 = sphi 0, %s116
      %s118 = sphi 0, %s116
      %s119 = sphi 0, %s118
      %s133 = sphi 0, %s119
      %s137 = sphi 0, %s137
      %s139 = sphi 0, %s137
      %s140 = sphi 0, %s139
      %s154 = sphi 0, %s140
      %s160 = sphi 0, %s162
      %s163 = sphi 0, %s160
      %s164 = sphi 0, %s163
      %s180 = sphi 0, %s164
    $region4: #{bbox_lstm_forward.1} parent=1 // loop_header_branch
      %17 = sbr.rel (%p15) target = $region8
    $region5: #{bbox_lstm_forward.1} parent=1 // loop_body
      %s19 = ssub.s32 %s14, 1
      %s20 = ssub.s32 %s14, 2
      %s21 = sadd.s32 %s14, 1
      %s22 = ssub.s32 %s14, %s21
      %p23 = scmp.eq.s32.totalorder %s22, 0
      %s25 = sadd.s32 %s24, 1
      %s26 = scalar_select %p23, %s24, %s25
      %p29 = pneg %p23
      %p30 = scmp.eq.s32.totalorder %s14, 1
      %p31 = por %p29, %p30
      %p32 = scmp.ne.s32.totalorder %s24, %s27
      %p33 = scmp.eq.s32.totalorder %s14, 0
      %p34 = por %p32, %p33
      %p35 = scmp.ne.s32.totalorder %s24, %s27
      %p36 = scmp.eq.s32.totalorder %s19, 1
      %p37 = por %p35, %p36
      %p38 = scmp.ne.s32.totalorder %s27, %s28
      %p39 = scmp.eq.s32.totalorder %s19, 0
      %p40 = por %p38, %p39
      %p41 = scmp.ne.s32.totalorder %s27, %s28
      %p42 = scmp.eq.s32.totalorder %s20, 1
      %p43 = por %p41, %p42
      %p45 = scmp.ne.s32.totalorder %s28, %s44
      %p46 = scmp.eq.s32.totalorder %s20, 0
      %p47 = por %p45, %p46
      %s48 = ssub.s32 %s14, %s21
      %p49 = scmp.eq.s32.totalorder %s48, 0
      %s51 = sadd.s32 %s50, 1
      %s52 = scalar_select %p49, %s50, %s51
      %p55 = pneg %p49
      %p56 = scmp.eq.s32.totalorder %s14, 1
      %p57 = por %p55, %p56
      %p58 = scmp.ne.s32.totalorder %s50, %s53
      %p59 = scmp.eq.s32.totalorder %s14, 0
      %p60 = por %p58, %p59
      %p61 = scmp.ne.s32.totalorder %s50, %s53
      %p62 = scmp.eq.s32.totalorder %s19, 1
      %p63 = por %p61, %p62
      %p64 = scmp.ne.s32.totalorder %s53, %s54
      %p65 = scmp.eq.s32.totalorder %s19, 0
      %p66 = por %p64, %p65
      %p67 = scmp.ne.s32.totalorder %s53, %s54
      %p68 = scmp.eq.s32.totalorder %s20, 1
      %p69 = por %p67, %p68
      %p71 = scmp.ne.s32.totalorder %s54, %s70
      %p72 = scmp.eq.s32.totalorder %s20, 0
      %p73 = por %p71, %p72
      %s75 = sadd.s32 %s74, 1
      %p78 = scmp.eq.s32.totalorder %s14, 1
      %p79 = scmp.ne.s32.totalorder %s74, %s76
      %p80 = scmp.eq.s32.totalorder %s14, 0
      %p81 = por %p79, %p80
      %p82 = scmp.ne.s32.totalorder %s74, %s76
      %p83 = scmp.eq.s32.totalorder %s19, 1
      %p84 = por %p82, %p83
      %p85 = scmp.ne.s32.totalorder %s76, %s77
      %p86 = scmp.eq.s32.totalorder %s19, 0
      %p87 = por %p85, %p86
      %p88 = scmp.ne.s32.totalorder %s76, %s77
      %p89 = scmp.eq.s32.totalorder %s20, 1
      %p90 = por %p88, %p89
      %p92 = scmp.ne.s32.totalorder %s77, %s91
      %p93 = scmp.eq.s32.totalorder %s20, 0
      %p94 = por %p92, %p93
      %s96 = sadd.s32 %s95, 1
      %p99 = scmp.eq.s32.totalorder %s14, 1
      %p100 = scmp.ne.s32.totalorder %s95, %s97
      %p101 = scmp.eq.s32.totalorder %s14, 0
      %p102 = por %p100, %p101
      %p103 = scmp.ne.s32.totalorder %s95, %s97
      %p104 = scmp.eq.s32.totalorder %s19, 1
      %p105 = por %p103, %p104
      %p106 = scmp.ne.s32.totalorder %s97, %s98
      %p107 = scmp.eq.s32.totalorder %s19, 0
      %p108 = por %p106, %p107
      %p109 = scmp.ne.s32.totalorder %s97, %s98
      %p110 = scmp.eq.s32.totalorder %s20, 1
      %p111 = por %p109, %p110
      %p113 = scmp.ne.s32.totalorder %s98, %s112
      %p114 = scmp.eq.s32.totalorder %s20, 0
      %p115 = por %p113, %p114
      %s117 = sadd.s32 %s116, 1
      %p120 = scmp.eq.s32.totalorder %s14, 1
      %p121 = scmp.ne.s32.totalorder %s116, %s118
      %p122 = scmp.eq.s32.totalorder %s14, 0
      %p123 = por %p121, %p122
      %p124 = scmp.ne.s32.totalorder %s116, %s118
      %p125 = scmp.eq.s32.totalorder %s19, 1
      %p126 = por %p124, %p125
      %p127 = scmp.ne.s32.totalorder %s118, %s119
      %p128 = scmp.eq.s32.totalorder %s19, 0
      %p129 = por %p127, %p128
      %p130 = scmp.ne.s32.totalorder %s118, %s119
      %p131 = scmp.eq.s32.totalorder %s20, 1
      %p132 = por %p130, %p131
      %p134 = scmp.ne.s32.totalorder %s119, %s133
      %p135 = scmp.eq.s32.totalorder %s20, 0
      %p136 = por %p134, %p135
      %s138 = sadd.s32 %s137, 1
      %p141 = scmp.eq.s32.totalorder %s14, 1
      %p142 = scmp.ne.s32.totalorder %s137, %s139
      %p143 = scmp.eq.s32.totalorder %s14, 0
      %p144 = por %p142, %p143
      %p145 = scmp.ne.s32.totalorder %s137, %s139
      %p146 = scmp.eq.s32.totalorder %s19, 1
      %p147 = por %p145, %p146
      %p148 = scmp.ne.s32.totalorder %s139, %s140
      %p149 = scmp.eq.s32.totalorder %s19, 0
      %p150 = por %p148, %p149
      %p151 = scmp.ne.s32.totalorder %s139, %s140
      %p152 = scmp.eq.s32.totalorder %s20, 1
      %p153 = por %p151, %p152
      %p155 = scmp.ne.s32.totalorder %s140, %s154
      %p156 = scmp.eq.s32.totalorder %s20, 0
      %p157 = por %p155, %p156
      %s158 = ssub.s32 %s14, %s21
      %p159 = scmp.eq.s32.totalorder %s158, 0
      %s161 = sadd.s32 %s160, 1
      %s162 = scalar_select %p159, %s160, %s161
      %p165 = pneg %p159
      %p166 = scmp.eq.s32.totalorder %s14, 1
      %p167 = por %p165, %p166
      %p168 = scmp.ne.s32.totalorder %s160, %s163
      %p169 = scmp.eq.s32.totalorder %s14, 0
      %p170 = por %p168, %p169
      %p171 = scmp.ne.s32.totalorder %s160, %s163
      %p172 = scmp.eq.s32.totalorder %s19, 1
      %p173 = por %p171, %p172
      %p174 = scmp.ne.s32.totalorder %s163, %s164
      %p175 = scmp.eq.s32.totalorder %s19, 0
      %p176 = por %p174, %p175
      %p177 = scmp.ne.s32.totalorder %s163, %s164
      %p178 = scmp.eq.s32.totalorder %s20, 1
      %p179 = por %p177, %p178
      %p181 = scmp.ne.s32.totalorder %s164, %s180
      %p182 = scmp.eq.s32.totalorder %s20, 0
      %p183 = por %p181, %p182
      %p184 = scmp.le.s32.totalorder 1, %s14
      %p185 = scmp.lt.s32.totalorder %s14, 3
      %p186 = pnand %p184, %p185
      %p187 = pneg %p186
      // Predicated region
      $region9: #{bbox_lstm_forward.1} parent=5 // pred_check
        _
      $region10: #{bbox_lstm_forward.1} parent=5 // pred_check_branch
        %189 = sbr.rel (%p186) target = $region12
      $region11: #{bbox_lstm_forward.1} parent=5 // pred_region
        %s190 = ssub.s32 %s14, 1
        // Predicated region
        $region13: #{bbox_lstm_forward.1} parent=11 // pred_check
          %p191 = pneg %p87
        $region14: #{bbox_lstm_forward.1} parent=11 // pred_check_branch
          %193 = sbr.rel (%p191) target = $region16
        $region15: #{bbox_lstm_forward.1} parent=11 // pred_region
          _
        $region16: #{bbox_lstm_forward.1} parent=11 // pred_fallthru
          _
        // Predicated region
        $region17: #{bbox_lstm_forward.1} parent=11 // pred_check
          %p194 = pneg %p108
        $region18: #{bbox_lstm_forward.1} parent=11 // pred_check_branch
          %196 = sbr.rel (%p194) target = $region20
        $region19: #{bbox_lstm_forward.1} parent=11 // pred_region
          %s198 = ssub.s32 2048, 2048
          %199 = vsyncadd [#allocation5], %s198
          %s200 = sshll.u32 [#allocation4], 4
          %s201 = int_to_ptr.vmem [resolvable:$true] %s200
          %206 = dma.hbm_to_vmem [thread:$0]  %s3, 2048, %s201, [#allocation5], 128, 128, 8
        $region20: #{bbox_lstm_forward.1} parent=11 // pred_fallthru
          _
        // Predicated region
        $region21: #{bbox_lstm_forward.1} parent=11 // pred_check
          %p207 = pneg %p129
        $region22: #{bbox_lstm_forward.1} parent=11 // pred_check_branch
          %209 = sbr.rel (%p207) target = $region24
        $region23: #{bbox_lstm_forward.1} parent=11 // pred_region
          %s211 = ssub.s32 2048, 2048
          %212 = vsyncadd [#allocation7], %s211
          %s213 = sshll.u32 [#allocation6], 4
          %s214 = int_to_ptr.vmem [resolvable:$true] %s213
          %219 = dma.hbm_to_vmem [thread:$0]  %s4, 2048, %s214, [#allocation7], 128, 128, 8
        $region24: #{bbox_lstm_forward.1} parent=11 // pred_fallthru
          _
        // Predicated region
        $region25: #{bbox_lstm_forward.1} parent=11 // pred_check
          %p220 = pneg %p150
        $region26: #{bbox_lstm_forward.1} parent=11 // pred_check_branch
          %222 = sbr.rel (%p220) target = $region28
        $region27: #{bbox_lstm_forward.1} parent=11 // pred_region
          _
        $region28: #{bbox_lstm_forward.1} parent=11 // pred_fallthru
          _
      $region12: #{bbox_lstm_forward.1} parent=5 // pred_fallthru
        _
      %p223 = scmp.lt.s32.totalorder %s14, 2
      // Predicated region
      $region29: #{bbox_lstm_forward.1} parent=5 // pred_check
        %p224 = pneg %p223
      $region30: #{bbox_lstm_forward.1} parent=5 // pred_check_branch
        %226 = sbr.rel (%p224) target = $region32
      $region31: #{bbox_lstm_forward.1} parent=5 // pred_region
        // Predicated region
        $region33: #{bbox_lstm_forward.1} parent=31 // pred_check
          %p227 = pneg %p34
        $region34: #{bbox_lstm_forward.1} parent=31 // pred_check_branch
          %229 = sbr.rel (%p227) target = $region36
        $region35: #{bbox_lstm_forward.1} parent=31 // pred_region
          %s230 = sand.u32 %s24, 1
          %s231 = sand.u32 %s24, 1
          %s232 = smul.addr %s231, 192
          %s233 = scalar_lea.vmem [#allocation3], %s232
          %s234 = smul.addr %s14, 4
          %s235 = smul.addr %s234, 8
          %s236 = scalar_lea.vmem %s0, %s235
          // Predicated region
          $region37: #{bbox_lstm_forward.1} parent=35 // pred_check
            _
          $region38: #{bbox_lstm_forward.1} parent=35 // pred_check_branch
            %238 = sbr.rel (0) target = $region40
          $region39: #{bbox_lstm_forward.1} parent=35 // pred_region
            // Predicated region
            $region41: #{bbox_lstm_forward.1} parent=39 // pred_check
              _
            $region42: #{bbox_lstm_forward.1} parent=39 // pred_check_branch
              %240 = sbr.rel (0) target = $region44
            $region43: #{bbox_lstm_forward.1} parent=39 // pred_region
              loop: start=0, step=1, limit=1
              $region45: #{bbox_lstm_forward.1} parent=43 // loop_pre_header
                _
              $region46: #{bbox_lstm_forward.1} parent=43 // loop_header
                %s242 = sphi 0, %s246
                %p243 = scmp.ge.s32.totalorder %s242, 1
                %s247 = sphi %s236, %s236
                %s248 = sphi %s233, %s233
              $region47: #{bbox_lstm_forward.1} parent=43 // loop_header_branch
                %245 = sbr.rel (%p243) target = $region51
              $region48: #{bbox_lstm_forward.1} parent=43 // loop_body
                %v249 = vld [vmem:[%s247] sm:$0xff]
                %250 = vst [vmem:[%s248] sm:$0xff] %v249
                %v251 = vld [vmem:[%s247 + $0x8] sm:$0xff]
                %252 = vst [vmem:[%s248 + $0x8] sm:$0xff] %v251
                %v253 = vld [vmem:[%s247 + $0x10] sm:$0xff]
                %254 = vst [vmem:[%s248 + $0x10] sm:$0xff] %v253
                %v255 = vld [vmem:[%s247 + $0x18] sm:$0xff]
                %256 = vst [vmem:[%s248 + $0x18] sm:$0xff] %v255
                %v257 = vld [vmem:[%s247 + $0x40] sm:$0xff]
                %258 = vst [vmem:[%s248 + $0x20] sm:$0xff] %v257
                %v259 = vld [vmem:[%s247 + $0x48] sm:$0xff]
                %260 = vst [vmem:[%s248 + $0x28] sm:$0xff] %v259
                %v261 = vld [vmem:[%s247 + $0x50] sm:$0xff]
                %262 = vst [vmem:[%s248 + $0x30] sm:$0xff] %v261
                %v263 = vld [vmem:[%s247 + $0x58] sm:$0xff]
                %264 = vst [vmem:[%s248 + $0x38] sm:$0xff] %v263
                %v265 = vld [vmem:[%s247 + $0x80] sm:$0xff]
                %266 = vst [vmem:[%s248 + $0x40] sm:$0xff] %v265
                %v267 = vld [vmem:[%s247 + $0x88] sm:$0xff]
                %268 = vst [vmem:[%s248 + $0x48] sm:$0xff] %v267
                %v269 = vld [vmem:[%s247 + $0x90] sm:$0xff]
                %270 = vst [vmem:[%s248 + $0x50] sm:$0xff] %v269
                %v271 = vld [vmem:[%s247 + $0x98] sm:$0xff]
                %272 = vst [vmem:[%s248 + $0x58] sm:$0xff] %v271
                %v273 = vld [vmem:[%s247 + $0xc0] sm:$0xff]
                %274 = vst [vmem:[%s248 + $0x60] sm:$0xff] %v273
                %v275 = vld [vmem:[%s247 + $0xc8] sm:$0xff]
                %276 = vst [vmem:[%s248 + $0x68] sm:$0xff] %v275
                %v277 = vld [vmem:[%s247 + $0xd0] sm:$0xff]
                %278 = vst [vmem:[%s248 + $0x70] sm:$0xff] %v277
                %v279 = vld [vmem:[%s247 + $0xd8] sm:$0xff]
                %280 = vst [vmem:[%s248 + $0x78] sm:$0xff] %v279
                %v281 = vld [vmem:[%s247 + $0x100] sm:$0xff]
                %282 = vst [vmem:[%s248 + $0x80] sm:$0xff] %v281
                %v283 = vld [vmem:[%s247 + $0x108] sm:$0xff]
                %284 = vst [vmem:[%s248 + $0x88] sm:$0xff] %v283
                %v285 = vld [vmem:[%s247 + $0x110] sm:$0xff]
                %286 = vst [vmem:[%s248 + $0x90] sm:$0xff] %v285
                %v287 = vld [vmem:[%s247 + $0x118] sm:$0xff]
                %288 = vst [vmem:[%s248 + $0x98] sm:$0xff] %v287
                %v289 = vld [vmem:[%s247 + $0x140] sm:$0xff]
                %290 = vst [vmem:[%s248 + $0xa0] sm:$0xff] %v289
                %v291 = vld [vmem:[%s247 + $0x148] sm:$0xff]
                %292 = vst [vmem:[%s248 + $0xa8] sm:$0xff] %v291
                %v293 = vld [vmem:[%s247 + $0x150] sm:$0xff]
                %294 = vst [vmem:[%s248 + $0xb0] sm:$0xff] %v293
                %v295 = vld [vmem:[%s247 + $0x158] sm:$0xff]
                %296 = vst [vmem:[%s248 + $0xb8] sm:$0xff] %v295
              $region49: #{bbox_lstm_forward.1} parent=43 // loop_footer
                %s246 = sadd.s32 1, %s242
              $region50: #{bbox_lstm_forward.1} parent=43 // loop_footer_branch
                %241 = sbr.rel target = $region46
              $region51: #{bbox_lstm_forward.1} parent=43 // loop_exit
                _
            $region44: #{bbox_lstm_forward.1} parent=39 // pred_fallthru
              _
            // Predicated region
            $region52: #{bbox_lstm_forward.1} parent=39 // pred_check
              _
            $region53: #{bbox_lstm_forward.1} parent=39 // pred_check_branch
              %298 = sbr.rel target = $region55
            $region54: #{bbox_lstm_forward.1} parent=39 // pred_region
              _
            $region55: #{bbox_lstm_forward.1} parent=39 // pred_fallthru
              _
          $region40: #{bbox_lstm_forward.1} parent=35 // pred_fallthru
            _
          %299 = vnop
        $region36: #{bbox_lstm_forward.1} parent=31 // pred_fallthru
          _
        // Predicated region
        $region56: #{bbox_lstm_forward.1} parent=31 // pred_check
          %p300 = pneg %p60
        $region57: #{bbox_lstm_forward.1} parent=31 // pred_check_branch
          %302 = sbr.rel (%p300) target = $region59
        $region58: #{bbox_lstm_forward.1} parent=31 // pred_region
          %p303 = scmp.lt.s32.totalorder %s14, 1
          %s304 = scalar_select %p303, %s14, 1
          %s305 = smul.addr %s304, 8
          %s306 = scalar_lea.vmem %s1, %s305
        $region59: #{bbox_lstm_forward.1} parent=31 // pred_fallthru
          _
      $region32: #{bbox_lstm_forward.1} parent=5 // pred_fallthru
        _
      %p307 = scmp.le.s32.totalorder 1, %s14
      %p308 = scmp.lt.s32.totalorder %s14, 3
      %p309 = pnand %p307, %p308
      %p310 = pneg %p309
      // Predicated region
      $region60: #{bbox_lstm_forward.1} parent=5 // pred_check
        _
      $region61: #{bbox_lstm_forward.1} parent=5 // pred_check_branch
        %312 = sbr.rel (%p309) target = $region63
      $region62: #{bbox_lstm_forward.1} parent=5 // pred_region
        %s313 = ssub.s32 %s14, 1
        %s314 = sand.u32 %s27, 1
        %s315 = sand.u32 %s27, 1
        %s316 = smul.addr %s315, 192
        %s317 = scalar_lea.vmem [#allocation3], %s316
        // Predicated region
        $region64: #{bbox_lstm_forward.1} parent=62 // pred_check
          %p318 = pneg %p40
        $region65: #{bbox_lstm_forward.1} parent=62 // pred_check_branch
          %320 = sbr.rel (%p318) target = $region67
        $region66: #{bbox_lstm_forward.1} parent=62 // pred_region
          _
        $region67: #{bbox_lstm_forward.1} parent=62 // pred_fallthru
          _
        // Predicated region
        $region68: #{bbox_lstm_forward.1} parent=62 // pred_check
          %p321 = pneg %p108
        $region69: #{bbox_lstm_forward.1} parent=62 // pred_check_branch
          %323 = sbr.rel (%p321) target = $region71
        $region70: #{bbox_lstm_forward.1} parent=62 // pred_region
          %324 = dma.done [#allocation5], 2048
        $region71: #{bbox_lstm_forward.1} parent=62 // pred_fallthru
          _
        // Predicated region
        $region72: #{bbox_lstm_forward.1} parent=62 // pred_check
          %p325 = pneg %p129
        $region73: #{bbox_lstm_forward.1} parent=62 // pred_check_branch
          %327 = sbr.rel (%p325) target = $region75
        $region74: #{bbox_lstm_forward.1} parent=62 // pred_region
          %328 = dma.done [#allocation7], 2048
        $region75: #{bbox_lstm_forward.1} parent=62 // pred_fallthru
          _
        %s329 = sand.u32 %s27, 1
        %s330 = sand.u32 %s27, 1
        %s331 = smul.addr %s330, 192
        %s332 = scalar_lea.vmem [#allocation3], %s331
        %p333 = pneg %p40
        %p334 = pneg %p37
        %p335 = scmp.lt.s32.totalorder %s19, 1
        %s336 = scalar_select %p335, %s19, 1
        %s337 = smul.addr %s336, 8
        %s338 = scalar_lea.vmem %s1, %s337
        %p339 = pneg %p66
        %p340 = pneg %p63
        %p341 = pneg %p87
        %p342 = pneg %p84
        %p343 = pneg %p108
        %p344 = pneg %p105
        %p345 = pneg %p129
        %p346 = pneg %p126
        %p347 = pneg %p150
        %p348 = pneg %p147
        %p349 = pneg %p176
        %p350 = pneg %p173
        %s351 = sand.u32 %s163, 1
        %s352 = sand.u32 %s163, 1
        %s353 = smul.addr %s352, 48
        %s354 = scalar_lea.vmem [#allocation8], %s353
        %p355 = scmp.lt.s32.totalorder %s19, 1
        %s356 = scalar_select %p355, %s19, 1
        %s357 = smul.addr %s356, 8
        %s358 = scalar_lea.vmem %s1, %s357
        %v359 = vld [vmem:[%s317] sm:$0xff]
        %v360 = vld [vmem:[%s317 + $0x8] sm:$0xff]
        %v361 = vld [vmem:[%s317 + $0x10] sm:$0xff]
        %v362 = vld [vmem:[%s317 + $0x18] sm:$0xff]
        %v363 = vld [vmem:[%s2] sm:$0xff]
        %v364 = vld [vmem:[%s2 + $0x8] sm:$0xff]
        %v365 = vld [vmem:[%s2 + $0x10] sm:$0xff]
        %v366 = vld [vmem:[%s2 + $0x18] sm:$0xff]
        %v367 = vld [vmem:[%s2 + $0x20] sm:$0xff]
        %v368 = vld [vmem:[%s2 + $0x28] sm:$0xff]
        %v369 = vld [vmem:[%s2 + $0x30] sm:$0xff]
        %v370 = vld [vmem:[%s2 + $0x38] sm:$0xff]
        %v371 = vld [vmem:[%s2 + $0x40] sm:$0xff]
        %v372 = vld [vmem:[%s2 + $0x48] sm:$0xff]
        %v373 = vld [vmem:[%s2 + $0x50] sm:$0xff]
        %v374 = vld [vmem:[%s2 + $0x58] sm:$0xff]
        %v375 = vld [vmem:[%s2 + $0x60] sm:$0xff]
        %v376 = vld [vmem:[%s2 + $0x68] sm:$0xff]
        %v377 = vld [vmem:[%s2 + $0x70] sm:$0xff]
        %v378 = vld [vmem:[%s2 + $0x78] sm:$0xff]
        %v379 = vld [vmem:[%s2 + $0x80] sm:$0xff]
        %v380 = vld [vmem:[%s2 + $0x88] sm:$0xff]
        %v381 = vld [vmem:[%s2 + $0x90] sm:$0xff]
        %v382 = vld [vmem:[%s2 + $0x98] sm:$0xff]
        %v383 = vld [vmem:[%s2 + $0xa0] sm:$0xff]
        %v384 = vld [vmem:[%s2 + $0xa8] sm:$0xff]
        %v385 = vld [vmem:[%s2 + $0xb0] sm:$0xff]
        %v386 = vld [vmem:[%s2 + $0xb8] sm:$0xff]
        %v387 = vld [vmem:[%s2 + $0xc0] sm:$0xff]
        %v388 = vld [vmem:[%s2 + $0xc8] sm:$0xff]
        %v389 = vld [vmem:[%s2 + $0xd0] sm:$0xff]
        %v390 = vld [vmem:[%s2 + $0xd8] sm:$0xff]
        %v391 = vld [vmem:[%s2 + $0xe0] sm:$0xff]
        %v392 = vld [vmem:[%s2 + $0xe8] sm:$0xff]
        %v393 = vld [vmem:[%s2 + $0xf0] sm:$0xff]
        %v394 = vld [vmem:[%s2 + $0xf8] sm:$0xff]
        %v395 = vld [vmem:[%s2 + $0x100] sm:$0xff]
        %v396 = vld [vmem:[%s2 + $0x108] sm:$0xff]
        %v397 = vld [vmem:[%s2 + $0x110] sm:$0xff]
        %v398 = vld [vmem:[%s2 + $0x118] sm:$0xff]
        %v399 = vld [vmem:[%s2 + $0x120] sm:$0xff]
        %v400 = vld [vmem:[%s2 + $0x128] sm:$0xff]
        %v401 = vld [vmem:[%s2 + $0x130] sm:$0xff]
        %v402 = vld [vmem:[%s2 + $0x138] sm:$0xff]
        %v403 = vld [vmem:[%s2 + $0x140] sm:$0xff]
        %v404 = vld [vmem:[%s2 + $0x148] sm:$0xff]
        %v405 = vld [vmem:[%s2 + $0x150] sm:$0xff]
        %v406 = vld [vmem:[%s2 + $0x158] sm:$0xff]
        %v407 = vld [vmem:[%s2 + $0x160] sm:$0xff]
        %v408 = vld [vmem:[%s2 + $0x168] sm:$0xff]
        %v409 = vld [vmem:[%s2 + $0x170] sm:$0xff]
        %v410 = vld [vmem:[%s2 + $0x178] sm:$0xff]
        %v411 = vld [vmem:[%s2 + $0x180] sm:$0xff]
        %v412 = vld [vmem:[%s2 + $0x188] sm:$0xff]
        %v413 = vld [vmem:[%s2 + $0x190] sm:$0xff]
        %v414 = vld [vmem:[%s2 + $0x198] sm:$0xff]
        %v415 = vld [vmem:[%s2 + $0x1a0] sm:$0xff]
        %v416 = vld [vmem:[%s2 + $0x1a8] sm:$0xff]
        %v417 = vld [vmem:[%s2 + $0x1b0] sm:$0xff]
        %v418 = vld [vmem:[%s2 + $0x1b8] sm:$0xff]
        %v419 = vld [vmem:[%s2 + $0x1c0] sm:$0xff]
        %v420 = vld [vmem:[%s2 + $0x1c8] sm:$0xff]
        %v421 = vld [vmem:[%s2 + $0x1d0] sm:$0xff]
        %v422 = vld [vmem:[%s2 + $0x1d8] sm:$0xff]
        %v423 = vld [vmem:[%s2 + $0x1e0] sm:$0xff]
        %v424 = vld [vmem:[%s2 + $0x1e8] sm:$0xff]
        %v425 = vld [vmem:[%s2 + $0x1f0] sm:$0xff]
        %v426 = vld [vmem:[%s2 + $0x1f8] sm:$0xff]
        %427 = vmatprep.subr.mxu0 %v364
        %428 = vmatpush1.msra.mxu0 %v363
        %429 = vmatprep.subr.mxu0 %v368
        %430 = vmatpush1.msra.mxu0 %v367
        %431 = vmatprep.subr.mxu0 %v372
        %432 = vmatpush1.msra.mxu0 %v371
        %433 = vmatprep.subr.mxu0 %v376
        %434 = vmatpush1.msra.mxu0 %v375
        %435 = vmatprep.subr.mxu0 %v380
        %436 = vmatpush1.msra.mxu0 %v379
        %437 = vmatprep.subr.mxu0 %v384
        %438 = vmatpush1.msra.mxu0 %v383
        %439 = vmatprep.subr.mxu0 %v388
        %440 = vmatpush1.msra.mxu0 %v387
        %441 = vmatprep.subr.mxu0 %v392
        %442 = vmatpush1.msra.mxu0 %v391
        %443 = vmatprep.subr.mxu0 %v396
        %444 = vmatpush1.msra.mxu0 %v395
        %445 = vmatprep.subr.mxu0 %v400
        %446 = vmatpush1.msra.mxu0 %v399
        %447 = vmatprep.subr.mxu0 %v404
        %448 = vmatpush1.msra.mxu0 %v403
        %449 = vmatprep.subr.mxu0 %v408
        %450 = vmatpush1.msra.mxu0 %v407
        %451 = vmatprep.subr.mxu0 %v412
        %452 = vmatpush1.msra.mxu0 %v411
        %453 = vmatprep.subr.mxu0 %v416
        %454 = vmatpush1.msra.mxu0 %v415
        %455 = vmatprep.subr.mxu0 %v420
        %456 = vmatpush1.msra.mxu0 %v419
        %457 = vmatprep.subr.mxu0 %v424
        %458 = vmatpush1.msra.mxu0 %v423
        %459 = vmatprep.subr.mxu0 0.0
        %460 = vmatpush1.msra.mxu0 0.0
        %461 = vmatprep.subr.mxu0 0.0
        %462 = vmatpush1.msra.mxu0 0.0
        %463 = vmatprep.subr.mxu0 0.0
        %464 = vmatpush1.msra.mxu0 0.0
        %465 = vmatprep.subr.mxu0 0.0
        %466 = vmatpush1.msra.mxu0 0.0
        %467 = vmatprep.subr.mxu0 0.0
        %468 = vmatpush1.msra.mxu0 0.0
        %469 = vmatprep.subr.mxu0 0.0
        %470 = vmatpush1.msra.mxu0 0.0
        %471 = vmatprep.subr.mxu0 0.0
        %472 = vmatpush1.msra.mxu0 0.0
        %473 = vmatprep.subr.mxu0 0.0
        %474 = vmatpush1.msra.mxu0 0.0
        %475 = vmatprep.subr.mxu0 0.0
        %476 = vmatpush1.msra.mxu0 0.0
        %477 = vmatprep.subr.mxu0 0.0
        %478 = vmatpush1.msra.mxu0 0.0
        %479 = vmatprep.subr.mxu0 0.0
        %480 = vmatpush1.msra.mxu0 0.0
        %481 = vmatprep.subr.mxu0 0.0
        %482 = vmatpush1.msra.mxu0 0.0
        %483 = vmatprep.subr.mxu0 0.0
        %484 = vmatpush1.msra.mxu0 0.0
        %485 = vmatprep.subr.mxu0 0.0
        %486 = vmatpush1.msra.mxu0 0.0
        %487 = vmatprep.subr.mxu0 0.0
        %488 = vmatpush1.msra.mxu0 0.0
        %489 = vmatprep.subr.mxu0 0.0
        %490 = vmatpush1.msra.mxu0 0.0
        %491 = vmatprep.mubr.f32.mxu0 0.0
        %492 = vmatmul.mubr.f32.gmra.mrb[0].mxu0 0.0
        %v493 = vpop.f32.mrb[0].mxu0
        %v494 = vadd.f32 0.0, %v493
        %v495 = vpop.f32.mrb[0].mxu0
        %v496 = vadd.f32 0.0, %v495
        %497 = vdwg.mxu0
        %498 = vmatprep.subr.mxu0 %v366
        %499 = vmatpush1.msra.mxu0 %v365
        %500 = vmatprep.subr.mxu0 %v370
        %501 = vmatpush1.msra.mxu0 %v369
        %502 = vmatprep.subr.mxu0 %v374
        %503 = vmatpush1.msra.mxu0 %v373
        %504 = vmatprep.subr.mxu0 %v378
        %505 = vmatpush1.msra.mxu0 %v377
        %506 = vmatprep.subr.mxu0 %v382
        %507 = vmatpush1.msra.mxu0 %v381
        %508 = vmatprep.subr.mxu0 %v386
        %509 = vmatpush1.msra.mxu0 %v385
        %510 = vmatprep.subr.mxu0 %v390
        %511 = vmatpush1.msra.mxu0 %v389
        %512 = vmatprep.subr.mxu0 %v394
        %513 = vmatpush1.msra.mxu0 %v393
        %514 = vmatprep.subr.mxu0 %v398
        %515 = vmatpush1.msra.mxu0 %v397
        %516 = vmatprep.subr.mxu0 %v402
        %517 = vmatpush1.msra.mxu0 %v401
        %518 = vmatprep.subr.mxu0 %v406
        %519 = vmatpush1.msra.mxu0 %v405
        %520 = vmatprep.subr.mxu0 %v410
        %521 = vmatpush1.msra.mxu0 %v409
        %522 = vmatprep.subr.mxu0 %v414
        %523 = vmatpush1.msra.mxu0 %v413
        %524 = vmatprep.subr.mxu0 %v418
        %525 = vmatpush1.msra.mxu0 %v417
        %526 = vmatprep.subr.mxu0 %v422
        %527 = vmatpush1.msra.mxu0 %v421
        %528 = vmatprep.subr.mxu0 %v426
        %529 = vmatpush1.msra.mxu0 %v425
        %530 = vmatprep.subr.mxu0 0.0
        %531 = vmatpush1.msra.mxu0 0.0
        %532 = vmatprep.subr.mxu0 0.0
        %533 = vmatpush1.msra.mxu0 0.0
        %534 = vmatprep.subr.mxu0 0.0
        %535 = vmatpush1.msra.mxu0 0.0
        %536 = vmatprep.subr.mxu0 0.0
        %537 = vmatpush1.msra.mxu0 0.0
        %538 = vmatprep.subr.mxu0 0.0
        %539 = vmatpush1.msra.mxu0 0.0
        %540 = vmatprep.subr.mxu0 0.0
        %541 = vmatpush1.msra.mxu0 0.0
        %542 = vmatprep.subr.mxu0 0.0
        %543 = vmatpush1.msra.mxu0 0.0
        %544 = vmatprep.subr.mxu0 0.0
        %545 = vmatpush1.msra.mxu0 0.0
        %546 = vmatprep.subr.mxu0 0.0
        %547 = vmatpush1.msra.mxu0 0.0
        %548 = vmatprep.subr.mxu0 0.0
        %549 = vmatpush1.msra.mxu0 0.0
        %550 = vmatprep.subr.mxu0 0.0
        %551 = vmatpush1.msra.mxu0 0.0
        %552 = vmatprep.subr.mxu0 0.0
        %553 = vmatpush1.msra.mxu0 0.0
        %554 = vmatprep.subr.mxu0 0.0
        %555 = vmatpush1.msra.mxu0 0.0
        %556 = vmatprep.subr.mxu0 0.0
        %557 = vmatpush1.msra.mxu0 0.0
        %558 = vmatprep.subr.mxu0 0.0
        %559 = vmatpush1.msra.mxu0 0.0
        %560 = vmatprep.subr.mxu0 0.0
        %561 = vmatpush1.msra.mxu0 0.0
        %562 = vmatprep.mubr.f32.mxu0 0.0
        %563 = vmatmul.mubr.f32.gmra.mrb[0].mxu0 0.0
        %v564 = vpop.f32.mrb[0].mxu0
        %v565 = vadd.f32 0.0, %v564
        %v566 = vpop.f32.mrb[0].mxu0
        %v567 = vadd.f32 0.0, %v566
        %568 = vdwg.mxu0
        %v569 = vadd.f32 %v359, %v494
        %v570 = vadd.f32 %v360, %v496
        %v571 = vadd.f32 %v361, %v565
        %v572 = vadd.f32 %v362, %v567
        %v573 = vxor.u32 %v569, 2147483648
        %v574 = vmul.f32 %v573, 1.442695
        %v575 = vpow.pop %v574
        %v576 = vadd.f32 %v575, 1.0
        %v577 = vrcp.pop %v576
        %v578 = vmul.f32 1.0, %v577
        %v579 = vxor.u32 %v570, 2147483648
        %v580 = vmul.f32 %v579, 1.442695
        %v581 = vpow.pop %v580
        %v582 = vadd.f32 %v581, 1.0
        %v583 = vrcp.pop %v582
        %v584 = vmul.f32 1.0, %v583
        %v585 = vtanh.pop %v571
        %v586 = vxor.u32 %v572, 2147483648
        %v587 = vmul.f32 %v586, 1.442695
        %v588 = vpow.pop %v587
        %v589 = vadd.f32 %v588, 1.0
        %v590 = vrcp.pop %v589
        %v591 = vmul.f32 1.0, %v590
        %v592 = vmul.f32 %v584, 0.0
        %v593 = vmul.f32 %v578, %v585
        %v594 = vadd.f32 %v592, %v593
        %v595 = vtanh.pop %v594
        %v596 = vmul.f32 %v591, %v595
        %597 = vst [vmem:[#allocation2] sm:$0xff] %v596
        %s598 = scalar_lea.vmem %s317, 32 [#allocation3]
        %v599 = vld [vmem:[%s598] sm:$0xff]
        %v600 = vld [vmem:[%s598 + $0x8] sm:$0xff]
        %v601 = vld [vmem:[%s598 + $0x10] sm:$0xff]
        %v602 = vld [vmem:[%s598 + $0x18] sm:$0xff]
        %v603 = vld [vmem:[%s2] sm:$0xff]
        %v604 = vld [vmem:[%s2 + $0x8] sm:$0xff]
        %v605 = vld [vmem:[%s2 + $0x10] sm:$0xff]
        %v606 = vld [vmem:[%s2 + $0x18] sm:$0xff]
        %v607 = vld [vmem:[%s2 + $0x20] sm:$0xff]
        %v608 = vld [vmem:[%s2 + $0x28] sm:$0xff]
        %v609 = vld [vmem:[%s2 + $0x30] sm:$0xff]
        %v610 = vld [vmem:[%s2 + $0x38] sm:$0xff]
        %v611 = vld [vmem:[%s2 + $0x40] sm:$0xff]
        %v612 = vld [vmem:[%s2 + $0x48] sm:$0xff]
        %v613 = vld [vmem:[%s2 + $0x50] sm:$0xff]
        %v614 = vld [vmem:[%s2 + $0x58] sm:$0xff]
        %v615 = vld [vmem:[%s2 + $0x60] sm:$0xff]
        %v616 = vld [vmem:[%s2 + $0x68] sm:$0xff]
        %v617 = vld [vmem:[%s2 + $0x70] sm:$0xff]
        %v618 = vld [vmem:[%s2 + $0x78] sm:$0xff]
        %v619 = vld [vmem:[%s2 + $0x80] sm:$0xff]
        %v620 = vld [vmem:[%s2 + $0x88] sm:$0xff]
        %v621 = vld [vmem:[%s2 + $0x90] sm:$0xff]
        %v622 = vld [vmem:[%s2 + $0x98] sm:$0xff]
        %v623 = vld [vmem:[%s2 + $0xa0] sm:$0xff]
        %v624 = vld [vmem:[%s2 + $0xa8] sm:$0xff]
        %v625 = vld [vmem:[%s2 + $0xb0] sm:$0xff]
        %v626 = vld [vmem:[%s2 + $0xb8] sm:$0xff]
        %v627 = vld [vmem:[%s2 + $0xc0] sm:$0xff]
        %v628 = vld [vmem:[%s2 + $0xc8] sm:$0xff]
        %v629 = vld [vmem:[%s2 + $0xd0] sm:$0xff]
        %v630 = vld [vmem:[%s2 + $0xd8] sm:$0xff]
        %v631 = vld [vmem:[%s2 + $0xe0] sm:$0xff]
        %v632 = vld [vmem:[%s2 + $0xe8] sm:$0xff]
        %v633 = vld [vmem:[%s2 + $0xf0] sm:$0xff]
        %v634 = vld [vmem:[%s2 + $0xf8] sm:$0xff]
        %v635 = vld [vmem:[%s2 + $0x100] sm:$0xff]
        %v636 = vld [vmem:[%s2 + $0x108] sm:$0xff]
        %v637 = vld [vmem:[%s2 + $0x110] sm:$0xff]
        %v638 = vld [vmem:[%s2 + $0x118] sm:$0xff]
        %v639 = vld [vmem:[%s2 + $0x120] sm:$0xff]
        %v640 = vld [vmem:[%s2 + $0x128] sm:$0xff]
        %v641 = vld [vmem:[%s2 + $0x130] sm:$0xff]
        %v642 = vld [vmem:[%s2 + $0x138] sm:$0xff]
        %v643 = vld [vmem:[%s2 + $0x140] sm:$0xff]
        %v644 = vld [vmem:[%s2 + $0x148] sm:$0xff]
        %v645 = vld [vmem:[%s2 + $0x150] sm:$0xff]
        %v646 = vld [vmem:[%s2 + $0x158] sm:$0xff]
        %v647 = vld [vmem:[%s2 + $0x160] sm:$0xff]
        %v648 = vld [vmem:[%s2 + $0x168] sm:$0xff]
        %v649 = vld [vmem:[%s2 + $0x170] sm:$0xff]
        %v650 = vld [vmem:[%s2 + $0x178] sm:$0xff]
        %v651 = vld [vmem:[%s2 + $0x180] sm:$0xff]
        %v652 = vld [vmem:[%s2 + $0x188] sm:$0xff]
        %v653 = vld [vmem:[%s2 + $0x190] sm:$0xff]
        %v654 = vld [vmem:[%s2 + $0x198] sm:$0xff]
        %v655 = vld [vmem:[%s2 + $0x1a0] sm:$0xff]
        %v656 = vld [vmem:[%s2 + $0x1a8] sm:$0xff]
        %v657 = vld [vmem:[%s2 + $0x1b0] sm:$0xff]
        %v658 = vld [vmem:[%s2 + $0x1b8] sm:$0xff]
        %v659 = vld [vmem:[%s2 + $0x1c0] sm:$0xff]
        %v660 = vld [vmem:[%s2 + $0x1c8] sm:$0xff]
        %v661 = vld [vmem:[%s2 + $0x1d0] sm:$0xff]
        %v662 = vld [vmem:[%s2 + $0x1d8] sm:$0xff]
        %v663 = vld [vmem:[%s2 + $0x1e0] sm:$0xff]
        %v664 = vld [vmem:[%s2 + $0x1e8] sm:$0xff]
        %v665 = vld [vmem:[%s2 + $0x1f0] sm:$0xff]
        %v666 = vld [vmem:[%s2 + $0x1f8] sm:$0xff]
        %667 = vmatprep.subr.mxu0 %v604
        %668 = vmatpush1.msra.mxu0 %v603
        %669 = vmatprep.subr.mxu0 %v608
        %670 = vmatpush1.msra.mxu0 %v607
        %671 = vmatprep.subr.mxu0 %v612
        %672 = vmatpush1.msra.mxu0 %v611
        %673 = vmatprep.subr.mxu0 %v616
        %674 = vmatpush1.msra.mxu0 %v615
        %675 = vmatprep.subr.mxu0 %v620
        %676 = vmatpush1.msra.mxu0 %v619
        %677 = vmatprep.subr.mxu0 %v624
        %678 = vmatpush1.msra.mxu0 %v623
        %679 = vmatprep.subr.mxu0 %v628
        %680 = vmatpush1.msra.mxu0 %v627
        %681 = vmatprep.subr.mxu0 %v632
        %682 = vmatpush1.msra.mxu0 %v631
        %683 = vmatprep.subr.mxu0 %v636
        %684 = vmatpush1.msra.mxu0 %v635
        %685 = vmatprep.subr.mxu0 %v640
        %686 = vmatpush1.msra.mxu0 %v639
        %687 = vmatprep.subr.mxu0 %v644
        %688 = vmatpush1.msra.mxu0 %v643
        %689 = vmatprep.subr.mxu0 %v648
        %690 = vmatpush1.msra.mxu0 %v647
        %691 = vmatprep.subr.mxu0 %v652
        %692 = vmatpush1.msra.mxu0 %v651
        %693 = vmatprep.subr.mxu0 %v656
        %694 = vmatpush1.msra.mxu0 %v655
        %695 = vmatprep.subr.mxu0 %v660
        %696 = vmatpush1.msra.mxu0 %v659
        %697 = vmatprep.subr.mxu0 %v664
        %698 = vmatpush1.msra.mxu0 %v663
        %699 = vmatprep.subr.mxu0 0.0
        %700 = vmatpush1.msra.mxu0 0.0
        %701 = vmatprep.subr.mxu0 0.0
        %702 = vmatpush1.msra.mxu0 0.0
        %703 = vmatprep.subr.mxu0 0.0
        %704 = vmatpush1.msra.mxu0 0.0
        %705 = vmatprep.subr.mxu0 0.0
        %706 = vmatpush1.msra.mxu0 0.0
        %707 = vmatprep.subr.mxu0 0.0
        %708 = vmatpush1.msra.mxu0 0.0
        %709 = vmatprep.subr.mxu0 0.0
        %710 = vmatpush1.msra.mxu0 0.0
        %711 = vmatprep.subr.mxu0 0.0
        %712 = vmatpush1.msra.mxu0 0.0
        %713 = vmatprep.subr.mxu0 0.0
        %714 = vmatpush1.msra.mxu0 0.0
        %715 = vmatprep.subr.mxu0 0.0
        %716 = vmatpush1.msra.mxu0 0.0
        %717 = vmatprep.subr.mxu0 0.0
        %718 = vmatpush1.msra.mxu0 0.0
        %719 = vmatprep.subr.mxu0 0.0
        %720 = vmatpush1.msra.mxu0 0.0
        %721 = vmatprep.subr.mxu0 0.0
        %722 = vmatpush1.msra.mxu0 0.0
        %723 = vmatprep.subr.mxu0 0.0
        %724 = vmatpush1.msra.mxu0 0.0
        %725 = vmatprep.subr.mxu0 0.0
        %726 = vmatpush1.msra.mxu0 0.0
        %727 = vmatprep.subr.mxu0 0.0
        %728 = vmatpush1.msra.mxu0 0.0
        %729 = vmatprep.subr.mxu0 0.0
        %730 = vmatpush1.msra.mxu0 0.0
        %731 = vmatprep.mubr.f32.mxu0 0.0
        %732 = vmatmul.mubr.f32.gmra.mrb[0].mxu0 %v596
        %v733 = vpop.f32.mrb[0].mxu0
        %v734 = vadd.f32 0.0, %v733
        %v735 = vpop.f32.mrb[0].mxu0
        %v736 = vadd.f32 0.0, %v735
        %737 = vdwg.mxu0
        %738 = vmatprep.subr.mxu0 %v606
        %739 = vmatpush1.msra.mxu0 %v605
        %740 = vmatprep.subr.mxu0 %v610
        %741 = vmatpush1.msra.mxu0 %v609
        %742 = vmatprep.subr.mxu0 %v614
        %743 = vmatpush1.msra.mxu0 %v613
        %744 = vmatprep.subr.mxu0 %v618
        %745 = vmatpush1.msra.mxu0 %v617
        %746 = vmatprep.subr.mxu0 %v622
        %747 = vmatpush1.msra.mxu0 %v621
        %748 = vmatprep.subr.mxu0 %v626
        %749 = vmatpush1.msra.mxu0 %v625
        %750 = vmatprep.subr.mxu0 %v630
        %751 = vmatpush1.msra.mxu0 %v629
        %752 = vmatprep.subr.mxu0 %v634
        %753 = vmatpush1.msra.mxu0 %v633
        %754 = vmatprep.subr.mxu0 %v638
        %755 = vmatpush1.msra.mxu0 %v637
        %756 = vmatprep.subr.mxu0 %v642
        %757 = vmatpush1.msra.mxu0 %v641
        %758 = vmatprep.subr.mxu0 %v646
        %759 = vmatpush1.msra.mxu0 %v645
        %760 = vmatprep.subr.mxu0 %v650
        %761 = vmatpush1.msra.mxu0 %v649
        %762 = vmatprep.subr.mxu0 %v654
        %763 = vmatpush1.msra.mxu0 %v653
        %764 = vmatprep.subr.mxu0 %v658
        %765 = vmatpush1.msra.mxu0 %v657
        %766 = vmatprep.subr.mxu0 %v662
        %767 = vmatpush1.msra.mxu0 %v661
        %768 = vmatprep.subr.mxu0 %v666
        %769 = vmatpush1.msra.mxu0 %v665
        %770 = vmatprep.subr.mxu0 0.0
        %771 = vmatpush1.msra.mxu0 0.0
        %772 = vmatprep.subr.mxu0 0.0
        %773 = vmatpush1.msra.mxu0 0.0
        %774 = vmatprep.subr.mxu0 0.0
        %775 = vmatpush1.msra.mxu0 0.0
        %776 = vmatprep.subr.mxu0 0.0
        %777 = vmatpush1.msra.mxu0 0.0
        %778 = vmatprep.subr.mxu0 0.0
        %779 = vmatpush1.msra.mxu0 0.0
        %780 = vmatprep.subr.mxu0 0.0
        %781 = vmatpush1.msra.mxu0 0.0
        %782 = vmatprep.subr.mxu0 0.0
        %783 = vmatpush1.msra.mxu0 0.0
        %784 = vmatprep.subr.mxu0 0.0
        %785 = vmatpush1.msra.mxu0 0.0
        %786 = vmatprep.subr.mxu0 0.0
        %787 = vmatpush1.msra.mxu0 0.0
        %788 = vmatprep.subr.mxu0 0.0
        %789 = vmatpush1.msra.mxu0 0.0
        %790 = vmatprep.subr.mxu0 0.0
        %791 = vmatpush1.msra.mxu0 0.0
        %792 = vmatprep.subr.mxu0 0.0
        %793 = vmatpush1.msra.mxu0 0.0
        %794 = vmatprep.subr.mxu0 0.0
        %795 = vmatpush1.msra.mxu0 0.0
        %796 = vmatprep.subr.mxu0 0.0
        %797 = vmatpush1.msra.mxu0 0.0
        %798 = vmatprep.subr.mxu0 0.0
        %799 = vmatpush1.msra.mxu0 0.0
        %800 = vmatprep.subr.mxu0 0.0
        %801 = vmatpush1.msra.mxu0 0.0
        %802 = vmatprep.mubr.f32.mxu0 0.0
        %803 = vmatmul.mubr.f32.gmra.mrb[0].mxu0 %v596
        %v804 = vpop.f32.mrb[0].mxu0
        %v805 = vadd.f32 0.0, %v804
        %v806 = vpop.f32.mrb[0].mxu0
        %v807 = vadd.f32 0.0, %v806
        %808 = vdwg.mxu0
        %v809 = vadd.f32 %v599, %v734
        %v810 = vadd.f32 %v600, %v736
        %v811 = vadd.f32 %v601, %v805
        %v812 = vadd.f32 %v602, %v807
        %v813 = vxor.u32 %v809, 2147483648
        %v814 = vmul.f32 %v813, 1.442695
        %v815 = vpow.pop %v814
        %v816 = vadd.f32 %v815, 1.0
        %v817 = vrcp.pop %v816
        %v818 = vmul.f32 1.0, %v817
        %v819 = vxor.u32 %v810, 2147483648
        %v820 = vmul.f32 %v819, 1.442695
        %v821 = vpow.pop %v820
        %v822 = vadd.f32 %v821, 1.0
        %v823 = vrcp.pop %v822
        %v824 = vmul.f32 1.0, %v823
        %v825 = vtanh.pop %v811
        %v826 = vxor.u32 %v812, 2147483648
        %v827 = vmul.f32 %v826, 1.442695
        %v828 = vpow.pop %v827
        %v829 = vadd.f32 %v828, 1.0
        %v830 = vrcp.pop %v829
        %v831 = vmul.f32 1.0, %v830
        %v832 = vmul.f32 %v824, %v594
        %v833 = vmul.f32 %v818, %v825
        %v834 = vadd.f32 %v832, %v833
        %v835 = vtanh.pop %v834
        %v836 = vmul.f32 %v831, %v835
        %s837 = scalar_lea.vmem [#allocation2], 8
        %838 = vst [vmem:[%s837] sm:$0xff] %v836
        %s839 = scalar_lea.vmem %s317, 64 [#allocation3]
        %v840 = vld [vmem:[%s839] sm:$0xff]
        %v841 = vld [vmem:[%s839 + $0x8] sm:$0xff]
        %v842 = vld [vmem:[%s839 + $0x10] sm:$0xff]
        %v843 = vld [vmem:[%s839 + $0x18] sm:$0xff]
        %v844 = vld [vmem:[%s2] sm:$0xff]
        %v845 = vld [vmem:[%s2 + $0x8] sm:$0xff]
        %v846 = vld [vmem:[%s2 + $0x10] sm:$0xff]
        %v847 = vld [vmem:[%s2 + $0x18] sm:$0xff]
        %v848 = vld [vmem:[%s2 + $0x20] sm:$0xff]
        %v849 = vld [vmem:[%s2 + $0x28] sm:$0xff]
        %v850 = vld [vmem:[%s2 + $0x30] sm:$0xff]
        %v851 = vld [vmem:[%s2 + $0x38] sm:$0xff]
        %v852 = vld [vmem:[%s2 + $0x40] sm:$0xff]
        %v853 = vld [vmem:[%s2 + $0x48] sm:$0xff]
        %v854 = vld [vmem:[%s2 + $0x50] sm:$0xff]
        %v855 = vld [vmem:[%s2 + $0x58] sm:$0xff]
        %v856 = vld [vmem:[%s2 + $0x60] sm:$0xff]
        %v857 = vld [vmem:[%s2 + $0x68] sm:$0xff]
        %v858 = vld [vmem:[%s2 + $0x70] sm:$0xff]
        %v859 = vld [vmem:[%s2 + $0x78] sm:$0xff]
        %v860 = vld [vmem:[%s2 + $0x80] sm:$0xff]
        %v861 = vld [vmem:[%s2 + $0x88] sm:$0xff]
        %v862 = vld [vmem:[%s2 + $0x90] sm:$0xff]
        %v863 = vld [vmem:[%s2 + $0x98] sm:$0xff]
        %v864 = vld [vmem:[%s2 + $0xa0] sm:$0xff]
        %v865 = vld [vmem:[%s2 + $0xa8] sm:$0xff]
        %v866 = vld [vmem:[%s2 + $0xb0] sm:$0xff]
        %v867 = vld [vmem:[%s2 + $0xb8] sm:$0xff]
        %v868 = vld [vmem:[%s2 + $0xc0] sm:$0xff]
        %v869 = vld [vmem:[%s2 + $0xc8] sm:$0xff]
        %v870 = vld [vmem:[%s2 + $0xd0] sm:$0xff]
        %v871 = vld [vmem:[%s2 + $0xd8] sm:$0xff]
        %v872 = vld [vmem:[%s2 + $0xe0] sm:$0xff]
        %v873 = vld [vmem:[%s2 + $0xe8] sm:$0xff]
        %v874 = vld [vmem:[%s2 + $0xf0] sm:$0xff]
        %v875 = vld [vmem:[%s2 + $0xf8] sm:$0xff]
        %v876 = vld [vmem:[%s2 + $0x100] sm:$0xff]
        %v877 = vld [vmem:[%s2 + $0x108] sm:$0xff]
        %v878 = vld [vmem:[%s2 + $0x110] sm:$0xff]
        %v879 = vld [vmem:[%s2 + $0x118] sm:$0xff]
        %v880 = vld [vmem:[%s2 + $0x120] sm:$0xff]
        %v881 = vld [vmem:[%s2 + $0x128] sm:$0xff]
        %v882 = vld [vmem:[%s2 + $0x130] sm:$0xff]
        %v883 = vld [vmem:[%s2 + $0x138] sm:$0xff]
        %v884 = vld [vmem:[%s2 + $0x140] sm:$0xff]
        %v885 = vld [vmem:[%s2 + $0x148] sm:$0xff]
        %v886 = vld [vmem:[%s2 + $0x150] sm:$0xff]
        %v887 = vld [vmem:[%s2 + $0x158] sm:$0xff]
        %v888 = vld [vmem:[%s2 + $0x160] sm:$0xff]
        %v889 = vld [vmem:[%s2 + $0x168] sm:$0xff]
        %v890 = vld [vmem:[%s2 + $0x170] sm:$0xff]
        %v891 = vld [vmem:[%s2 + $0x178] sm:$0xff]
        %v892 = vld [vmem:[%s2 + $0x180] sm:$0xff]
        %v893 = vld [vmem:[%s2 + $0x188] sm:$0xff]
        %v894 = vld [vmem:[%s2 + $0x190] sm:$0xff]
        %v895 = vld [vmem:[%s2 + $0x198] sm:$0xff]
        %v896 = vld [vmem:[%s2 + $0x1a0] sm:$0xff]
        %v897 = vld [vmem:[%s2 + $0x1a8] sm:$0xff]
        %v898 = vld [vmem:[%s2 + $0x1b0] sm:$0xff]
        %v899 = vld [vmem:[%s2 + $0x1b8] sm:$0xff]
        %v900 = vld [vmem:[%s2 + $0x1c0] sm:$0xff]
        %v901 = vld [vmem:[%s2 + $0x1c8] sm:$0xff]
        %v902 = vld [vmem:[%s2 + $0x1d0] sm:$0xff]
        %v903 = vld [vmem:[%s2 + $0x1d8] sm:$0xff]
        %v904 = vld [vmem:[%s2 + $0x1e0] sm:$0xff]
        %v905 = vld [vmem:[%s2 + $0x1e8] sm:$0xff]
        %v906 = vld [vmem:[%s2 + $0x1f0] sm:$0xff]
        %v907 = vld [vmem:[%s2 + $0x1f8] sm:$0xff]
        %908 = vmatprep.subr.mxu0 %v845
        %909 = vmatpush1.msra.mxu0 %v844
        %910 = vmatprep.subr.mxu0 %v849
        %911 = vmatpush1.msra.mxu0 %v848
        %912 = vmatprep.subr.mxu0 %v853
        %913 = vmatpush1.msra.mxu0 %v852
        %914 = vmatprep.subr.mxu0 %v857
        %915 = vmatpush1.msra.mxu0 %v856
        %916 = vmatprep.subr.mxu0 %v861
        %917 = vmatpush1.msra.mxu0 %v860
        %918 = vmatprep.subr.mxu0 %v865
        %919 = vmatpush1.msra.mxu0 %v864
        %920 = vmatprep.subr.mxu0 %v869
        %921 = vmatpush1.msra.mxu0 %v868
        %922 = vmatprep.subr.mxu0 %v873
        %923 = vmatpush1.msra.mxu0 %v872
        %924 = vmatprep.subr.mxu0 %v877
        %925 = vmatpush1.msra.mxu0 %v876
        %926 = vmatprep.subr.mxu0 %v881
        %927 = vmatpush1.msra.mxu0 %v880
        %928 = vmatprep.subr.mxu0 %v885
        %929 = vmatpush1.msra.mxu0 %v884
        %930 = vmatprep.subr.mxu0 %v889
        %931 = vmatpush1.msra.mxu0 %v888
        %932 = vmatprep.subr.mxu0 %v893
        %933 = vmatpush1.msra.mxu0 %v892
        %934 = vmatprep.subr.mxu0 %v897
        %935 = vmatpush1.msra.mxu0 %v896
        %936 = vmatprep.subr.mxu0 %v901
        %937 = vmatpush1.msra.mxu0 %v900
        %938 = vmatprep.subr.mxu0 %v905
        %939 = vmatpush1.msra.mxu0 %v904
        %940 = vmatprep.subr.mxu0 0.0
        %941 = vmatpush1.msra.mxu0 0.0
        %942 = vmatprep.subr.mxu0 0.0
        %943 = vmatpush1.msra.mxu0 0.0
        %944 = vmatprep.subr.mxu0 0.0
        %945 = vmatpush1.msra.mxu0 0.0
        %946 = vmatprep.subr.mxu0 0.0
        %947 = vmatpush1.msra.mxu0 0.0
        %948 = vmatprep.subr.mxu0 0.0
        %949 = vmatpush1.msra.mxu0 0.0
        %950 = vmatprep.subr.mxu0 0.0
        %951 = vmatpush1.msra.mxu0 0.0
        %952 = vmatprep.subr.mxu0 0.0
        %953 = vmatpush1.msra.mxu0 0.0
        %954 = vmatprep.subr.mxu0 0.0
        %955 = vmatpush1.msra.mxu0 0.0
        %956 = vmatprep.subr.mxu0 0.0
        %957 = vmatpush1.msra.mxu0 0.0
        %958 = vmatprep.subr.mxu0 0.0
        %959 = vmatpush1.msra.mxu0 0.0
        %960 = vmatprep.subr.mxu0 0.0
        %961 = vmatpush1.msra.mxu0 0.0
        %962 = vmatprep.subr.mxu0 0.0
        %963 = vmatpush1.msra.mxu0 0.0
        %964 = vmatprep.subr.mxu0 0.0
        %965 = vmatpush1.msra.mxu0 0.0
        %966 = vmatprep.subr.mxu0 0.0
        %967 = vmatpush1.msra.mxu0 0.0
        %968 = vmatprep.subr.mxu0 0.0
        %969 = vmatpush1.msra.mxu0 0.0
        %970 = vmatprep.subr.mxu0 0.0
        %971 = vmatpush1.msra.mxu0 0.0
        %972 = vmatprep.mubr.f32.mxu0 0.0
        %973 = vmatmul.mubr.f32.gmra.mrb[0].mxu0 %v836
        %v974 = vpop.f32.mrb[0].mxu0
        %v975 = vadd.f32 0.0, %v974
        %v976 = vpop.f32.mrb[0].mxu0
        %v977 = vadd.f32 0.0, %v976
        %978 = vdwg.mxu0
        %979 = vmatprep.subr.mxu0 %v847
        %980 = vmatpush1.msra.mxu0 %v846
        %981 = vmatprep.subr.mxu0 %v851
        %982 = vmatpush1.msra.mxu0 %v850
        %983 = vmatprep.subr.mxu0 %v855
        %984 = vmatpush1.msra.mxu0 %v854
        %985 = vmatprep.subr.mxu0 %v859
        %986 = vmatpush1.msra.mxu0 %v858
        %987 = vmatprep.subr.mxu0 %v863
        %988 = vmatpush1.msra.mxu0 %v862
        %989 = vmatprep.subr.mxu0 %v867
        %990 = vmatpush1.msra.mxu0 %v866
        %991 = vmatprep.subr.mxu0 %v871
        %992 = vmatpush1.msra.mxu0 %v870
        %993 = vmatprep.subr.mxu0 %v875
        %994 = vmatpush1.msra.mxu0 %v874
        %995 = vmatprep.subr.mxu0 %v879
        %996 = vmatpush1.msra.mxu0 %v878
        %997 = vmatprep.subr.mxu0 %v883
        %998 = vmatpush1.msra.mxu0 %v882
        %999 = vmatprep.subr.mxu0 %v887
        %1000 = vmatpush1.msra.mxu0 %v886
        %1001 = vmatprep.subr.mxu0 %v891
        %1002 = vmatpush1.msra.mxu0 %v890
        %1003 = vmatprep.subr.mxu0 %v895
        %1004 = vmatpush1.msra.mxu0 %v894
        %1005 = vmatprep.subr.mxu0 %v899
        %1006 = vmatpush1.msra.mxu0 %v898
        %1007 = vmatprep.subr.mxu0 %v903
        %1008 = vmatpush1.msra.mxu0 %v902
        %1009 = vmatprep.subr.mxu0 %v907
        %1010 = vmatpush1.msra.mxu0 %v906
        %1011 = vmatprep.subr.mxu0 0.0
        %1012 = vmatpush1.msra.mxu0 0.0
        %1013 = vmatprep.subr.mxu0 0.0
        %1014 = vmatpush1.msra.mxu0 0.0
        %1015 = vmatprep.subr.mxu0 0.0
        %1016 = vmatpush1.msra.mxu0 0.0
        %1017 = vmatprep.subr.mxu0 0.0
        %1018 = vmatpush1.msra.mxu0 0.0
        %1019 = vmatprep.subr.mxu0 0.0
        %1020 = vmatpush1.msra.mxu0 0.0
        %1021 = vmatprep.subr.mxu0 0.0
        %1022 = vmatpush1.msra.mxu0 0.0
        %1023 = vmatprep.subr.mxu0 0.0
        %1024 = vmatpush1.msra.mxu0 0.0
        %1025 = vmatprep.subr.mxu0 0.0
        %1026 = vmatpush1.msra.mxu0 0.0
        %1027 = vmatprep.subr.mxu0 0.0
        %1028 = vmatpush1.msra.mxu0 0.0
        %1029 = vmatprep.subr.mxu0 0.0
        %1030 = vmatpush1.msra.mxu0 0.0
        %1031 = vmatprep.subr.mxu0 0.0
        %1032 = vmatpush1.msra.mxu0 0.0
        %1033 = vmatprep.subr.mxu0 0.0
        %1034 = vmatpush1.msra.mxu0 0.0
        %1035 = vmatprep.subr.mxu0 0.0
        %1036 = vmatpush1.msra.mxu0 0.0
        %1037 = vmatprep.subr.mxu0 0.0
        %1038 = vmatpush1.msra.mxu0 0.0
        %1039 = vmatprep.subr.mxu0 0.0
        %1040 = vmatpush1.msra.mxu0 0.0
        %1041 = vmatprep.subr.mxu0 0.0
        %1042 = vmatpush1.msra.mxu0 0.0
        %1043 = vmatprep.mubr.f32.mxu0 0.0
        %1044 = vmatmul.mubr.f32.gmra.mrb[0].mxu0 %v836
        %v1045 = vpop.f32.mrb[0].mxu0
        %v1046 = vadd.f32 0.0, %v1045
        %v1047 = vpop.f32.mrb[0].mxu0
        %v1048 = vadd.f32 0.0, %v1047
        %1049 = vdwg.mxu0
        %v1050 = vadd.f32 %v840, %v975
        %v1051 = vadd.f32 %v841, %v977
        %v1052 = vadd.f32 %v842, %v1046
        %v1053 = vadd.f32 %v843, %v1048
        %v1054 = vxor.u32 %v1050, 2147483648
        %v1055 = vmul.f32 %v1054, 1.442695
        %v1056 = vpow.pop %v1055
        %v1057 = vadd.f32 %v1056, 1.0
        %v1058 = vrcp.pop %v1057
        %v1059 = vmul.f32 1.0, %v1058
        %v1060 = vxor.u32 %v1051, 2147483648
        %v1061 = vmul.f32 %v1060, 1.442695
        %v1062 = vpow.pop %v1061
        %v1063 = vadd.f32 %v1062, 1.0
        %v1064 = vrcp.pop %v1063
        %v1065 = vmul.f32 1.0, %v1064
        %v1066 = vtanh.pop %v1052
        %v1067 = vxor.u32 %v1053, 2147483648
        %v1068 = vmul.f32 %v1067, 1.442695
        %v1069 = vpow.pop %v1068
        %v1070 = vadd.f32 %v1069, 1.0
        %v1071 = vrcp.pop %v1070
        %v1072 = vmul.f32 1.0, %v1071
        %v1073 = vmul.f32 %v1065, %v834
        %v1074 = vmul.f32 %v1059, %v1066
        %v1075 = vadd.f32 %v1073, %v1074
        %v1076 = vtanh.pop %v1075
        %v1077 = vmul.f32 %v1072, %v1076
        %s1078 = scalar_lea.vmem [#allocation2], 16
        %1079 = vst [vmem:[%s1078] sm:$0xff] %v1077
        %s1080 = scalar_lea.vmem %s317, 96 [#allocation3]
        %v1081 = vld [vmem:[%s1080] sm:$0xff]
        %v1082 = vld [vmem:[%s1080 + $0x8] sm:$0xff]
        %v1083 = vld [vmem:[%s1080 + $0x10] sm:$0xff]
        %v1084 = vld [vmem:[%s1080 + $0x18] sm:$0xff]
        %v1085 = vld [vmem:[%s2] sm:$0xff]
        %v1086 = vld [vmem:[%s2 + $0x8] sm:$0xff]
        %v1087 = vld [vmem:[%s2 + $0x10] sm:$0xff]
        %v1088 = vld [vmem:[%s2 + $0x18] sm:$0xff]
        %v1089 = vld [vmem:[%s2 + $0x20] sm:$0xff]
        %v1090 = vld [vmem:[%s2 + $0x28] sm:$0xff]
        %v1091 = vld [vmem:[%s2 + $0x30] sm:$0xff]
        %v1092 = vld [vmem:[%s2 + $0x38] sm:$0xff]
        %v1093 = vld [vmem:[%s2 + $0x40] sm:$0xff]
        %v1094 = vld [vmem:[%s2 + $0x48] sm:$0xff]
        %v1095 = vld [vmem:[%s2 + $0x50] sm:$0xff]
        %v1096 = vld [vmem:[%s2 + $0x58] sm:$0xff]
        %v1097 = vld [vmem:[%s2 + $0x60] sm:$0xff]
        %v1098 = vld [vmem:[%s2 + $0x68] sm:$0xff]
        %v1099 = vld [vmem:[%s2 + $0x70] sm:$0xff]
        %v1100 = vld [vmem:[%s2 + $0x78] sm:$0xff]
        %v1101 = vld [vmem:[%s2 + $0x80] sm:$0xff]
        %v1102 = vld [vmem:[%s2 + $0x88] sm:$0xff]
        %v1103 = vld [vmem:[%s2 + $0x90] sm:$0xff]
        %v1104 = vld [vmem:[%s2 + $0x98] sm:$0xff]
        %v1105 = vld [vmem:[%s2 + $0xa0] sm:$0xff]
        %v1106 = vld [vmem:[%s2 + $0xa8] sm:$0xff]
        %v1107 = vld [vmem:[%s2 + $0xb0] sm:$0xff]
        %v1108 = vld [vmem:[%s2 + $0xb8] sm:$0xff]
        %v1109 = vld [vmem:[%s2 + $0xc0] sm:$0xff]
        %v1110 = vld [vmem:[%s2 + $0xc8] sm:$0xff]
        %v1111 = vld [vmem:[%s2 + $0xd0] sm:$0xff]
        %v1112 = vld [vmem:[%s2 + $0xd8] sm:$0xff]
        %v1113 = vld [vmem:[%s2 + $0xe0] sm:$0xff]
        %v1114 = vld [vmem:[%s2 + $0xe8] sm:$0xff]
        %v1115 = vld [vmem:[%s2 + $0xf0] sm:$0xff]
        %v1116 = vld [vmem:[%s2 + $0xf8] sm:$0xff]
        %v1117 = vld [vmem:[%s2 + $0x100] sm:$0xff]
        %v1118 = vld [vmem:[%s2 + $0x108] sm:$0xff]
        %v1119 = vld [vmem:[%s2 + $0x110] sm:$0xff]
        %v1120 = vld [vmem:[%s2 + $0x118] sm:$0xff]
        %v1121 = vld [vmem:[%s2 + $0x120] sm:$0xff]
        %v1122 = vld [vmem:[%s2 + $0x128] sm:$0xff]
        %v1123 = vld [vmem:[%s2 + $0x130] sm:$0xff]
        %v1124 = vld [vmem:[%s2 + $0x138] sm:$0xff]
        %v1125 = vld [vmem:[%s2 + $0x140] sm:$0xff]
        %v1126 = vld [vmem:[%s2 + $0x148] sm:$0xff]
        %v1127 = vld [vmem:[%s2 + $0x150] sm:$0xff]
        %v1128 = vld [vmem:[%s2 + $0x158] sm:$0xff]
        %v1129 = vld [vmem:[%s2 + $0x160] sm:$0xff]
        %v1130 = vld [vmem:[%s2 + $0x168] sm:$0xff]
        %v1131 = vld [vmem:[%s2 + $0x170] sm:$0xff]
        %v1132 = vld [vmem:[%s2 + $0x178] sm:$0xff]
        %v1133 = vld [vmem:[%s2 + $0x180] sm:$0xff]
        %v1134 = vld [vmem:[%s2 + $0x188] sm:$0xff]
        %v1135 = vld [vmem:[%s2 + $0x190] sm:$0xff]
        %v1136 = vld [vmem:[%s2 + $0x198] sm:$0xff]
        %v1137 = vld [vmem:[%s2 + $0x1a0] sm:$0xff]
        %v1138 = vld [vmem:[%s2 + $0x1a8] sm:$0xff]
        %v1139 = vld [vmem:[%s2 + $0x1b0] sm:$0xff]
        %v1140 = vld [vmem:[%s2 + $0x1b8] sm:$0xff]
        %v1141 = vld [vmem:[%s2 + $0x1c0] sm:$0xff]
        %v1142 = vld [vmem:[%s2 + $0x1c8] sm:$0xff]
        %v1143 = vld [vmem:[%s2 + $0x1d0] sm:$0xff]
        %v1144 = vld [vmem:[%s2 + $0x1d8] sm:$0xff]
        %v1145 = vld [vmem:[%s2 + $0x1e0] sm:$0xff]
        %v1146 = vld [vmem:[%s2 + $0x1e8] sm:$0xff]
        %v1147 = vld [vmem:[%s2 + $0x1f0] sm:$0xff]
        %v1148 = vld [vmem:[%s2 + $0x1f8] sm:$0xff]
        %1149 = vmatprep.subr.mxu0 %v1086
        %1150 = vmatpush1.msra.mxu0 %v1085
        %1151 = vmatprep.subr.mxu0 %v1090
        %1152 = vmatpush1.msra.mxu0 %v1089
        %1153 = vmatprep.subr.mxu0 %v1094
        %1154 = vmatpush1.msra.mxu0 %v1093
        %1155 = vmatprep.subr.mxu0 %v1098
        %1156 = vmatpush1.msra.mxu0 %v1097
        %1157 = vmatprep.subr.mxu0 %v1102
        %1158 = vmatpush1.msra.mxu0 %v1101
        %1159 = vmatprep.subr.mxu0 %v1106
        %1160 = vmatpush1.msra.mxu0 %v1105
        %1161 = vmatprep.subr.mxu0 %v1110
        %1162 = vmatpush1.msra.mxu0 %v1109
        %1163 = vmatprep.subr.mxu0 %v1114
        %1164 = vmatpush1.msra.mxu0 %v1113
        %1165 = vmatprep.subr.mxu0 %v1118
        %1166 = vmatpush1.msra.mxu0 %v1117
        %1167 = vmatprep.subr.mxu0 %v1122
        %1168 = vmatpush1.msra.mxu0 %v1121
        %1169 = vmatprep.subr.mxu0 %v1126
        %1170 = vmatpush1.msra.mxu0 %v1125
        %1171 = vmatprep.subr.mxu0 %v1130
        %1172 = vmatpush1.msra.mxu0 %v1129
        %1173 = vmatprep.subr.mxu0 %v1134
        %1174 = vmatpush1.msra.mxu0 %v1133
        %1175 = vmatprep.subr.mxu0 %v1138
        %1176 = vmatpush1.msra.mxu0 %v1137
        %1177 = vmatprep.subr.mxu0 %v1142
        %1178 = vmatpush1.msra.mxu0 %v1141
        %1179 = vmatprep.subr.mxu0 %v1146
        %1180 = vmatpush1.msra.mxu0 %v1145
        %1181 = vmatprep.subr.mxu0 0.0
        %1182 = vmatpush1.msra.mxu0 0.0
        %1183 = vmatprep.subr.mxu0 0.0
        %1184 = vmatpush1.msra.mxu0 0.0
        %1185 = vmatprep.subr.mxu0 0.0
        %1186 = vmatpush1.msra.mxu0 0.0
        %1187 = vmatprep.subr.mxu0 0.0
        %1188 = vmatpush1.msra.mxu0 0.0
        %1189 = vmatprep.subr.mxu0 0.0
        %1190 = vmatpush1.msra.mxu0 0.0
        %1191 = vmatprep.subr.mxu0 0.0
        %1192 = vmatpush1.msra.mxu0 0.0
        %1193 = vmatprep.subr.mxu0 0.0
        %1194 = vmatpush1.msra.mxu0 0.0
        %1195 = vmatprep.subr.mxu0 0.0
        %1196 = vmatpush1.msra.mxu0 0.0
        %1197 = vmatprep.subr.mxu0 0.0
        %1198 = vmatpush1.msra.mxu0 0.0
        %1199 = vmatprep.subr.mxu0 0.0
        %1200 = vmatpush1.msra.mxu0 0.0
        %1201 = vmatprep.subr.mxu0 0.0
        %1202 = vmatpush1.msra.mxu0 0.0
        %1203 = vmatprep.subr.mxu0 0.0
        %1204 = vmatpush1.msra.mxu0 0.0
        %1205 = vmatprep.subr.mxu0 0.0
        %1206 = vmatpush1.msra.mxu0 0.0
        %1207 = vmatprep.subr.mxu0 0.0
        %1208 = vmatpush1.msra.mxu0 0.0
        %1209 = vmatprep.subr.mxu0 0.0
        %1210 = vmatpush1.msra.mxu0 0.0
        %1211 = vmatprep.subr.mxu0 0.0
        %1212 = vmatpush1.msra.mxu0 0.0
        %1213 = vmatprep.mubr.f32.mxu0 0.0
        %1214 = vmatmul.mubr.f32.gmra.mrb[0].mxu0 %v1077
        %v1215 = vpop.f32.mrb[0].mxu0
        %v1216 = vadd.f32 0.0, %v1215
        %v1217 = vpop.f32.mrb[0].mxu0
        %v1218 = vadd.f32 0.0, %v1217
        %1219 = vdwg.mxu0
        %1220 = vmatprep.subr.mxu0 %v1088
        %1221 = vmatpush1.msra.mxu0 %v1087
        %1222 = vmatprep.subr.mxu0 %v1092
        %1223 = vmatpush1.msra.mxu0 %v1091
        %1224 = vmatprep.subr.mxu0 %v1096
        %1225 = vmatpush1.msra.mxu0 %v1095
        %1226 = vmatprep.subr.mxu0 %v1100
        %1227 = vmatpush1.msra.mxu0 %v1099
        %1228 = vmatprep.subr.mxu0 %v1104
        %1229 = vmatpush1.msra.mxu0 %v1103
        %1230 = vmatprep.subr.mxu0 %v1108
        %1231 = vmatpush1.msra.mxu0 %v1107
        %1232 = vmatprep.subr.mxu0 %v1112
        %1233 = vmatpush1.msra.mxu0 %v1111
        %1234 = vmatprep.subr.mxu0 %v1116
        %1235 = vmatpush1.msra.mxu0 %v1115
        %1236 = vmatprep.subr.mxu0 %v1120
        %1237 = vmatpush1.msra.mxu0 %v1119
        %1238 = vmatprep.subr.mxu0 %v1124
        %1239 = vmatpush1.msra.mxu0 %v1123
        %1240 = vmatprep.subr.mxu0 %v1128
        %1241 = vmatpush1.msra.mxu0 %v1127
        %1242 = vmatprep.subr.mxu0 %v1132
        %1243 = vmatpush1.msra.mxu0 %v1131
        %1244 = vmatprep.subr.mxu0 %v1136
        %1245 = vmatpush1.msra.mxu0 %v1135
        %1246 = vmatprep.subr.mxu0 %v1140
        %1247 = vmatpush1.msra.mxu0 %v1139
        %1248 = vmatprep.subr.mxu0 %v1144
        %1249 = vmatpush1.msra.mxu0 %v1143
        %1250 = vmatprep.subr.mxu0 %v1148
        %1251 = vmatpush1.msra.mxu0 %v1147
        %1252 = vmatprep.subr.mxu0 0.0
        %1253 = vmatpush1.msra.mxu0 0.0
        %1254 = vmatprep.subr.mxu0 0.0
        %1255 = vmatpush1.msra.mxu0 0.0
        %1256 = vmatprep.subr.mxu0 0.0
        %1257 = vmatpush1.msra.mxu0 0.0
        %1258 = vmatprep.subr.mxu0 0.0
        %1259 = vmatpush1.msra.mxu0 0.0
        %1260 = vmatprep.subr.mxu0 0.0
        %1261 = vmatpush1.msra.mxu0 0.0
        %1262 = vmatprep.subr.mxu0 0.0
        %1263 = vmatpush1.msra.mxu0 0.0
        %1264 = vmatprep.subr.mxu0 0.0
        %1265 = vmatpush1.msra.mxu0 0.0
        %1266 = vmatprep.subr.mxu0 0.0
        %1267 = vmatpush1.msra.mxu0 0.0
        %1268 = vmatprep.subr.mxu0 0.0
        %1269 = vmatpush1.msra.mxu0 0.0
        %1270 = vmatprep.subr.mxu0 0.0
        %1271 = vmatpush1.msra.mxu0 0.0
        %1272 = vmatprep.subr.mxu0 0.0
        %1273 = vmatpush1.msra.mxu0 0.0
        %1274 = vmatprep.subr.mxu0 0.0
        %1275 = vmatpush1.msra.mxu0 0.0
        %1276 = vmatprep.subr.mxu0 0.0
        %1277 = vmatpush1.msra.mxu0 0.0
        %1278 = vmatprep.subr.mxu0 0.0
        %1279 = vmatpush1.msra.mxu0 0.0
        %1280 = vmatprep.subr.mxu0 0.0
        %1281 = vmatpush1.msra.mxu0 0.0
        %1282 = vmatprep.subr.mxu0 0.0
        %1283 = vmatpush1.msra.mxu0 0.0
        %1284 = vmatprep.mubr.f32.mxu0 0.0
        %1285 = vmatmul.mubr.f32.gmra.mrb[0].mxu0 %v1077
        %v1286 = vpop.f32.mrb[0].mxu0
        %v1287 = vadd.f32 0.0, %v1286
        %v1288 = vpop.f32.mrb[0].mxu0
        %v1289 = vadd.f32 0.0, %v1288
        %1290 = vdwg.mxu0
        %v1291 = vadd.f32 %v1081, %v1216
        %v1292 = vadd.f32 %v1082, %v1218
        %v1293 = vadd.f32 %v1083, %v1287
        %v1294 = vadd.f32 %v1084, %v1289
        %v1295 = vxor.u32 %v1291, 2147483648
        %v1296 = vmul.f32 %v1295, 1.442695
        %v1297 = vpow.pop %v1296
        %v1298 = vadd.f32 %v1297, 1.0
        %v1299 = vrcp.pop %v1298
        %v1300 = vmul.f32 1.0, %v1299
        %v1301 = vxor.u32 %v1292, 2147483648
        %v1302 = vmul.f32 %v1301, 1.442695
        %v1303 = vpow.pop %v1302
        %v1304 = vadd.f32 %v1303, 1.0
        %v1305 = vrcp.pop %v1304
        %v1306 = vmul.f32 1.0, %v1305
        %v1307 = vtanh.pop %v1293
        %v1308 = vxor.u32 %v1294, 2147483648
        %v1309 = vmul.f32 %v1308, 1.442695
        %v1310 = vpow.pop %v1309
        %v1311 = vadd.f32 %v1310, 1.0
        %v1312 = vrcp.pop %v1311
        %v1313 = vmul.f32 1.0, %v1312
        %v1314 = vmul.f32 %v1306, %v1075
        %v1315 = vmul.f32 %v1300, %v1307
        %v1316 = vadd.f32 %v1314, %v1315
        %v1317 = vtanh.pop %v1316
        %v1318 = vmul.f32 %v1313, %v1317
        %s1319 = scalar_lea.vmem [#allocation2], 24
        %1320 = vst [vmem:[%s1319] sm:$0xff] %v1318
        %s1321 = scalar_lea.vmem %s317, 128 [#allocation3]
        %v1322 = vld [vmem:[%s1321] sm:$0xff]
        %v1323 = vld [vmem:[%s1321 + $0x8] sm:$0xff]
        %v1324 = vld [vmem:[%s1321 + $0x10] sm:$0xff]
        %v1325 = vld [vmem:[%s1321 + $0x18] sm:$0xff]
        %v1326 = vld [vmem:[%s2] sm:$0xff]
        %v1327 = vld [vmem:[%s2 + $0x8] sm:$0xff]
        %v1328 = vld [vmem:[%s2 + $0x10] sm:$0xff]
        %v1329 = vld [vmem:[%s2 + $0x18] sm:$0xff]
        %v1330 = vld [vmem:[%s2 + $0x20] sm:$0xff]
        %v1331 = vld [vmem:[%s2 + $0x28] sm:$0xff]
        %v1332 = vld [vmem:[%s2 + $0x30] sm:$0xff]
        %v1333 = vld [vmem:[%s2 + $0x38] sm:$0xff]
        %v1334 = vld [vmem:[%s2 + $0x40] sm:$0xff]
        %v1335 = vld [vmem:[%s2 + $0x48] sm:$0xff]
        %v1336 = vld [vmem:[%s2 + $0x50] sm:$0xff]
        %v1337 = vld [vmem:[%s2 + $0x58] sm:$0xff]
        %v1338 = vld [vmem:[%s2 + $0x60] sm:$0xff]
        %v1339 = vld [vmem:[%s2 + $0x68] sm:$0xff]
        %v1340 = vld [vmem:[%s2 + $0x70] sm:$0xff]
        %v1341 = vld [vmem:[%s2 + $0x78] sm:$0xff]
        %v1342 = vld [vmem:[%s2 + $0x80] sm:$0xff]
        %v1343 = vld [vmem:[%s2 + $0x88] sm:$0xff]
        %v1344 = vld [vmem:[%s2 + $0x90] sm:$0xff]
        %v1345 = vld [vmem:[%s2 + $0x98] sm:$0xff]
        %v1346 = vld [vmem:[%s2 + $0xa0] sm:$0xff]
        %v1347 = vld [vmem:[%s2 + $0xa8] sm:$0xff]
        %v1348 = vld [vmem:[%s2 + $0xb0] sm:$0xff]
        %v1349 = vld [vmem:[%s2 + $0xb8] sm:$0xff]
        %v1350 = vld [vmem:[%s2 + $0xc0] sm:$0xff]
        %v1351 = vld [vmem:[%s2 + $0xc8] sm:$0xff]
        %v1352 = vld [vmem:[%s2 + $0xd0] sm:$0xff]
        %v1353 = vld [vmem:[%s2 + $0xd8] sm:$0xff]
        %v1354 = vld [vmem:[%s2 + $0xe0] sm:$0xff]
        %v1355 = vld [vmem:[%s2 + $0xe8] sm:$0xff]
        %v1356 = vld [vmem:[%s2 + $0xf0] sm:$0xff]
        %v1357 = vld [vmem:[%s2 + $0xf8] sm:$0xff]
        %v1358 = vld [vmem:[%s2 + $0x100] sm:$0xff]
        %v1359 = vld [vmem:[%s2 + $0x108] sm:$0xff]
        %v1360 = vld [vmem:[%s2 + $0x110] sm:$0xff]
        %v1361 = vld [vmem:[%s2 + $0x118] sm:$0xff]
        %v1362 = vld [vmem:[%s2 + $0x120] sm:$0xff]
        %v1363 = vld [vmem:[%s2 + $0x128] sm:$0xff]
        %v1364 = vld [vmem:[%s2 + $0x130] sm:$0xff]
        %v1365 = vld [vmem:[%s2 + $0x138] sm:$0xff]
        %v1366 = vld [vmem:[%s2 + $0x140] sm:$0xff]
        %v1367 = vld [vmem:[%s2 + $0x148] sm:$0xff]
        %v1368 = vld [vmem:[%s2 + $0x150] sm:$0xff]
        %v1369 = vld [vmem:[%s2 + $0x158] sm:$0xff]
        %v1370 = vld [vmem:[%s2 + $0x160] sm:$0xff]
        %v1371 = vld [vmem:[%s2 + $0x168] sm:$0xff]
        %v1372 = vld [vmem:[%s2 + $0x170] sm:$0xff]
        %v1373 = vld [vmem:[%s2 + $0x178] sm:$0xff]
        %v1374 = vld [vmem:[%s2 + $0x180] sm:$0xff]
        %v1375 = vld [vmem:[%s2 + $0x188] sm:$0xff]
        %v1376 = vld [vmem:[%s2 + $0x190] sm:$0xff]
        %v1377 = vld [vmem:[%s2 + $0x198] sm:$0xff]
        %v1378 = vld [vmem:[%s2 + $0x1a0] sm:$0xff]
        %v1379 = vld [vmem:[%s2 + $0x1a8] sm:$0xff]
        %v1380 = vld [vmem:[%s2 + $0x1b0] sm:$0xff]
        %v1381 = vld [vmem:[%s2 + $0x1b8] sm:$0xff]
        %v1382 = vld [vmem:[%s2 + $0x1c0] sm:$0xff]
        %v1383 = vld [vmem:[%s2 + $0x1c8] sm:$0xff]
        %v1384 = vld [vmem:[%s2 + $0x1d0] sm:$0xff]
        %v1385 = vld [vmem:[%s2 + $0x1d8] sm:$0xff]
        %v1386 = vld [vmem:[%s2 + $0x1e0] sm:$0xff]
        %v1387 = vld [vmem:[%s2 + $0x1e8] sm:$0xff]
        %v1388 = vld [vmem:[%s2 + $0x1f0] sm:$0xff]
        %v1389 = vld [vmem:[%s2 + $0x1f8] sm:$0xff]
        %1390 = vmatprep.subr.mxu0 %v1327
        %1391 = vmatpush1.msra.mxu0 %v1326
        %1392 = vmatprep.subr.mxu0 %v1331
        %1393 = vmatpush1.msra.mxu0 %v1330
        %1394 = vmatprep.subr.mxu0 %v1335
        %1395 = vmatpush1.msra.mxu0 %v1334
        %1396 = vmatprep.subr.mxu0 %v1339
        %1397 = vmatpush1.msra.mxu0 %v1338
        %1398 = vmatprep.subr.mxu0 %v1343
        %1399 = vmatpush1.msra.mxu0 %v1342
        %1400 = vmatprep.subr.mxu0 %v1347
        %1401 = vmatpush1.msra.mxu0 %v1346
        %1402 = vmatprep.subr.mxu0 %v1351
        %1403 = vmatpush1.msra.mxu0 %v1350
        %1404 = vmatprep.subr.mxu0 %v1355
        %1405 = vmatpush1.msra.mxu0 %v1354
        %1406 = vmatprep.subr.mxu0 %v1359
        %1407 = vmatpush1.msra.mxu0 %v1358
        %1408 = vmatprep.subr.mxu0 %v1363
        %1409 = vmatpush1.msra.mxu0 %v1362
        %1410 = vmatprep.subr.mxu0 %v1367
        %1411 = vmatpush1.msra.mxu0 %v1366
        %1412 = vmatprep.subr.mxu0 %v1371
        %1413 = vmatpush1.msra.mxu0 %v1370
        %1414 = vmatprep.subr.mxu0 %v1375
        %1415 = vmatpush1.msra.mxu0 %v1374
        %1416 = vmatprep.subr.mxu0 %v1379
        %1417 = vmatpush1.msra.mxu0 %v1378
        %1418 = vmatprep.subr.mxu0 %v1383
        %1419 = vmatpush1.msra.mxu0 %v1382
        %1420 = vmatprep.subr.mxu0 %v1387
        %1421 = vmatpush1.msra.mxu0 %v1386
        %1422 = vmatprep.subr.mxu0 0.0
        %1423 = vmatpush1.msra.mxu0 0.0
        %1424 = vmatprep.subr.mxu0 0.0
        %1425 = vmatpush1.msra.mxu0 0.0
        %1426 = vmatprep.subr.mxu0 0.0
        %1427 = vmatpush1.msra.mxu0 0.0
        %1428 = vmatprep.subr.mxu0 0.0
        %1429 = vmatpush1.msra.mxu0 0.0
        %1430 = vmatprep.subr.mxu0 0.0
        %1431 = vmatpush1.msra.mxu0 0.0
        %1432 = vmatprep.subr.mxu0 0.0
        %1433 = vmatpush1.msra.mxu0 0.0
        %1434 = vmatprep.subr.mxu0 0.0
        %1435 = vmatpush1.msra.mxu0 0.0
        %1436 = vmatprep.subr.mxu0 0.0
        %1437 = vmatpush1.msra.mxu0 0.0
        %1438 = vmatprep.subr.mxu0 0.0
        %1439 = vmatpush1.msra.mxu0 0.0
        %1440 = vmatprep.subr.mxu0 0.0
        %1441 = vmatpush1.msra.mxu0 0.0
        %1442 = vmatprep.subr.mxu0 0.0
        %1443 = vmatpush1.msra.mxu0 0.0
        %1444 = vmatprep.subr.mxu0 0.0
        %1445 = vmatpush1.msra.mxu0 0.0
        %1446 = vmatprep.subr.mxu0 0.0
        %1447 = vmatpush1.msra.mxu0 0.0
        %1448 = vmatprep.subr.mxu0 0.0
        %1449 = vmatpush1.msra.mxu0 0.0
        %1450 = vmatprep.subr.mxu0 0.0
        %1451 = vmatpush1.msra.mxu0 0.0
        %1452 = vmatprep.subr.mxu0 0.0
        %1453 = vmatpush1.msra.mxu0 0.0
        %1454 = vmatprep.mubr.f32.mxu0 0.0
        %1455 = vmatmul.mubr.f32.gmra.mrb[0].mxu0 %v1318
        %v1456 = vpop.f32.mrb[0].mxu0
        %v1457 = vadd.f32 0.0, %v1456
        %v1458 = vpop.f32.mrb[0].mxu0
        %v1459 = vadd.f32 0.0, %v1458
        %1460 = vdwg.mxu0
        %1461 = vmatprep.subr.mxu0 %v1329
        %1462 = vmatpush1.msra.mxu0 %v1328
        %1463 = vmatprep.subr.mxu0 %v1333
        %1464 = vmatpush1.msra.mxu0 %v1332
        %1465 = vmatprep.subr.mxu0 %v1337
        %1466 = vmatpush1.msra.mxu0 %v1336
        %1467 = vmatprep.subr.mxu0 %v1341
        %1468 = vmatpush1.msra.mxu0 %v1340
        %1469 = vmatprep.subr.mxu0 %v1345
        %1470 = vmatpush1.msra.mxu0 %v1344
        %1471 = vmatprep.subr.mxu0 %v1349
        %1472 = vmatpush1.msra.mxu0 %v1348
        %1473 = vmatprep.subr.mxu0 %v1353
        %1474 = vmatpush1.msra.mxu0 %v1352
        %1475 = vmatprep.subr.mxu0 %v1357
        %1476 = vmatpush1.msra.mxu0 %v1356
        %1477 = vmatprep.subr.mxu0 %v1361
        %1478 = vmatpush1.msra.mxu0 %v1360
        %1479 = vmatprep.subr.mxu0 %v1365
        %1480 = vmatpush1.msra.mxu0 %v1364
        %1481 = vmatprep.subr.mxu0 %v1369
        %1482 = vmatpush1.msra.mxu0 %v1368
        %1483 = vmatprep.subr.mxu0 %v1373
        %1484 = vmatpush1.msra.mxu0 %v1372
        %1485 = vmatprep.subr.mxu0 %v1377
        %1486 = vmatpush1.msra.mxu0 %v1376
        %1487 = vmatprep.subr.mxu0 %v1381
        %1488 = vmatpush1.msra.mxu0 %v1380
        %1489 = vmatprep.subr.mxu0 %v1385
        %1490 = vmatpush1.msra.mxu0 %v1384
        %1491 = vmatprep.subr.mxu0 %v1389
        %1492 = vmatpush1.msra.mxu0 %v1388
        %1493 = vmatprep.subr.mxu0 0.0
        %1494 = vmatpush1.msra.mxu0 0.0
        %1495 = vmatprep.subr.mxu0 0.0
        %1496 = vmatpush1.msra.mxu0 0.0
        %1497 = vmatprep.subr.mxu0 0.0
        %1498 = vmatpush1.msra.mxu0 0.0
        %1499 = vmatprep.subr.mxu0 0.0
        %1500 = vmatpush1.msra.mxu0 0.0
        %1501 = vmatprep.subr.mxu0 0.0
        %1502 = vmatpush1.msra.mxu0 0.0
        %1503 = vmatprep.subr.mxu0 0.0
        %1504 = vmatpush1.msra.mxu0 0.0
        %1505 = vmatprep.subr.mxu0 0.0
        %1506 = vmatpush1.msra.mxu0 0.0
        %1507 = vmatprep.subr.mxu0 0.0
        %1508 = vmatpush1.msra.mxu0 0.0
        %1509 = vmatprep.subr.mxu0 0.0
        %1510 = vmatpush1.msra.mxu0 0.0
        %1511 = vmatprep.subr.mxu0 0.0
        %1512 = vmatpush1.msra.mxu0 0.0
        %1513 = vmatprep.subr.mxu0 0.0
        %1514 = vmatpush1.msra.mxu0 0.0
        %1515 = vmatprep.subr.mxu0 0.0
        %1516 = vmatpush1.msra.mxu0 0.0
        %1517 = vmatprep.subr.mxu0 0.0
        %1518 = vmatpush1.msra.mxu0 0.0
        %1519 = vmatprep.subr.mxu0 0.0
        %1520 = vmatpush1.msra.mxu0 0.0
        %1521 = vmatprep.subr.mxu0 0.0
        %1522 = vmatpush1.msra.mxu0 0.0
        %1523 = vmatprep.subr.mxu0 0.0
        %1524 = vmatpush1.msra.mxu0 0.0
        %1525 = vmatprep.mubr.f32.mxu0 0.0
        %1526 = vmatmul.mubr.f32.gmra.mrb[0].mxu0 %v1318
        %v1527 = vpop.f32.mrb[0].mxu0
        %v1528 = vadd.f32 0.0, %v1527
        %v1529 = vpop.f32.mrb[0].mxu0
        %v1530 = vadd.f32 0.0, %v1529
        %1531 = vdwg.mxu0
        %v1532 = vadd.f32 %v1322, %v1457
        %v1533 = vadd.f32 %v1323, %v1459
        %v1534 = vadd.f32 %v1324, %v1528
        %v1535 = vadd.f32 %v1325, %v1530
        %v1536 = vxor.u32 %v1532, 2147483648
        %v1537 = vmul.f32 %v1536, 1.442695
        %v1538 = vpow.pop %v1537
        %v1539 = vadd.f32 %v1538, 1.0
        %v1540 = vrcp.pop %v1539
        %v1541 = vmul.f32 1.0, %v1540
        %v1542 = vxor.u32 %v1533, 2147483648
        %v1543 = vmul.f32 %v1542, 1.442695
        %v1544 = vpow.pop %v1543
        %v1545 = vadd.f32 %v1544, 1.0
        %v1546 = vrcp.pop %v1545
        %v1547 = vmul.f32 1.0, %v1546
        %v1548 = vtanh.pop %v1534
        %v1549 = vxor.u32 %v1535, 2147483648
        %v1550 = vmul.f32 %v1549, 1.442695
        %v1551 = vpow.pop %v1550
        %v1552 = vadd.f32 %v1551, 1.0
        %v1553 = vrcp.pop %v1552
        %v1554 = vmul.f32 1.0, %v1553
        %v1555 = vmul.f32 %v1547, %v1316
        %v1556 = vmul.f32 %v1541, %v1548
        %v1557 = vadd.f32 %v1555, %v1556
        %v1558 = vtanh.pop %v1557
        %v1559 = vmul.f32 %v1554, %v1558
        %s1560 = scalar_lea.vmem [#allocation2], 32
        %1561 = vst [vmem:[%s1560] sm:$0xff] %v1559
        %s1562 = scalar_lea.vmem %s317, 160 [#allocation3]
        %v1563 = vld [vmem:[%s1562] sm:$0xff]
        %v1564 = vld [vmem:[%s1562 + $0x8] sm:$0xff]
        %v1565 = vld [vmem:[%s1562 + $0x10] sm:$0xff]
        %v1566 = vld [vmem:[%s1562 + $0x18] sm:$0xff]
        %v1567 = vld [vmem:[%s2] sm:$0xff]
        %v1568 = vld [vmem:[%s2 + $0x8] sm:$0xff]
        %v1569 = vld [vmem:[%s2 + $0x10] sm:$0xff]
        %v1570 = vld [vmem:[%s2 + $0x18] sm:$0xff]
        %v1571 = vld [vmem:[%s2 + $0x20] sm:$0xff]
        %v1572 = vld [vmem:[%s2 + $0x28] sm:$0xff]
        %v1573 = vld [vmem:[%s2 + $0x30] sm:$0xff]
        %v1574 = vld [vmem:[%s2 + $0x38] sm:$0xff]
        %v1575 = vld [vmem:[%s2 + $0x40] sm:$0xff]
        %v1576 = vld [vmem:[%s2 + $0x48] sm:$0xff]
        %v1577 = vld [vmem:[%s2 + $0x50] sm:$0xff]
        %v1578 = vld [vmem:[%s2 + $0x58] sm:$0xff]
        %v1579 = vld [vmem:[%s2 + $0x60] sm:$0xff]
        %v1580 = vld [vmem:[%s2 + $0x68] sm:$0xff]
        %v1581 = vld [vmem:[%s2 + $0x70] sm:$0xff]
        %v1582 = vld [vmem:[%s2 + $0x78] sm:$0xff]
        %v1583 = vld [vmem:[%s2 + $0x80] sm:$0xff]
        %v1584 = vld [vmem:[%s2 + $0x88] sm:$0xff]
        %v1585 = vld [vmem:[%s2 + $0x90] sm:$0xff]
        %v1586 = vld [vmem:[%s2 + $0x98] sm:$0xff]
        %v1587 = vld [vmem:[%s2 + $0xa0] sm:$0xff]
        %v1588 = vld [vmem:[%s2 + $0xa8] sm:$0xff]
        %v1589 = vld [vmem:[%s2 + $0xb0] sm:$0xff]
        %v1590 = vld [vmem:[%s2 + $0xb8] sm:$0xff]
        %v1591 = vld [vmem:[%s2 + $0xc0] sm:$0xff]
        %v1592 = vld [vmem:[%s2 + $0xc8] sm:$0xff]
        %v1593 = vld [vmem:[%s2 + $0xd0] sm:$0xff]
        %v1594 = vld [vmem:[%s2 + $0xd8] sm:$0xff]
        %v1595 = vld [vmem:[%s2 + $0xe0] sm:$0xff]
        %v1596 = vld [vmem:[%s2 + $0xe8] sm:$0xff]
        %v1597 = vld [vmem:[%s2 + $0xf0] sm:$0xff]
        %v1598 = vld [vmem:[%s2 + $0xf8] sm:$0xff]
        %v1599 = vld [vmem:[%s2 + $0x100] sm:$0xff]
        %v1600 = vld [vmem:[%s2 + $0x108] sm:$0xff]
        %v1601 = vld [vmem:[%s2 + $0x110] sm:$0xff]
        %v1602 = vld [vmem:[%s2 + $0x118] sm:$0xff]
        %v1603 = vld [vmem:[%s2 + $0x120] sm:$0xff]
        %v1604 = vld [vmem:[%s2 + $0x128] sm:$0xff]
        %v1605 = vld [vmem:[%s2 + $0x130] sm:$0xff]
        %v1606 = vld [vmem:[%s2 + $0x138] sm:$0xff]
        %v1607 = vld [vmem:[%s2 + $0x140] sm:$0xff]
        %v1608 = vld [vmem:[%s2 + $0x148] sm:$0xff]
        %v1609 = vld [vmem:[%s2 + $0x150] sm:$0xff]
        %v1610 = vld [vmem:[%s2 + $0x158] sm:$0xff]
        %v1611 = vld [vmem:[%s2 + $0x160] sm:$0xff]
        %v1612 = vld [vmem:[%s2 + $0x168] sm:$0xff]
        %v1613 = vld [vmem:[%s2 + $0x170] sm:$0xff]
        %v1614 = vld [vmem:[%s2 + $0x178] sm:$0xff]
        %v1615 = vld [vmem:[%s2 + $0x180] sm:$0xff]
        %v1616 = vld [vmem:[%s2 + $0x188] sm:$0xff]
        %v1617 = vld [vmem:[%s2 + $0x190] sm:$0xff]
        %v1618 = vld [vmem:[%s2 + $0x198] sm:$0xff]
        %v1619 = vld [vmem:[%s2 + $0x1a0] sm:$0xff]
        %v1620 = vld [vmem:[%s2 + $0x1a8] sm:$0xff]
        %v1621 = vld [vmem:[%s2 + $0x1b0] sm:$0xff]
        %v1622 = vld [vmem:[%s2 + $0x1b8] sm:$0xff]
        %v1623 = vld [vmem:[%s2 + $0x1c0] sm:$0xff]
        %v1624 = vld [vmem:[%s2 + $0x1c8] sm:$0xff]
        %v1625 = vld [vmem:[%s2 + $0x1d0] sm:$0xff]
        %v1626 = vld [vmem:[%s2 + $0x1d8] sm:$0xff]
        %v1627 = vld [vmem:[%s2 + $0x1e0] sm:$0xff]
        %v1628 = vld [vmem:[%s2 + $0x1e8] sm:$0xff]
        %v1629 = vld [vmem:[%s2 + $0x1f0] sm:$0xff]
        %v1630 = vld [vmem:[%s2 + $0x1f8] sm:$0xff]
        %1631 = vmatprep.subr.mxu0 %v1568
        %1632 = vmatpush1.msra.mxu0 %v1567
        %1633 = vmatprep.subr.mxu0 %v1572
        %1634 = vmatpush1.msra.mxu0 %v1571
        %1635 = vmatprep.subr.mxu0 %v1576
        %1636 = vmatpush1.msra.mxu0 %v1575
        %1637 = vmatprep.subr.mxu0 %v1580
        %1638 = vmatpush1.msra.mxu0 %v1579
        %1639 = vmatprep.subr.mxu0 %v1584
        %1640 = vmatpush1.msra.mxu0 %v1583
        %1641 = vmatprep.subr.mxu0 %v1588
        %1642 = vmatpush1.msra.mxu0 %v1587
        %1643 = vmatprep.subr.mxu0 %v1592
        %1644 = vmatpush1.msra.mxu0 %v1591
        %1645 = vmatprep.subr.mxu0 %v1596
        %1646 = vmatpush1.msra.mxu0 %v1595
        %1647 = vmatprep.subr.mxu0 %v1600
        %1648 = vmatpush1.msra.mxu0 %v1599
        %1649 = vmatprep.subr.mxu0 %v1604
        %1650 = vmatpush1.msra.mxu0 %v1603
        %1651 = vmatprep.subr.mxu0 %v1608
        %1652 = vmatpush1.msra.mxu0 %v1607
        %1653 = vmatprep.subr.mxu0 %v1612
        %1654 = vmatpush1.msra.mxu0 %v1611
        %1655 = vmatprep.subr.mxu0 %v1616
        %1656 = vmatpush1.msra.mxu0 %v1615
        %1657 = vmatprep.subr.mxu0 %v1620
        %1658 = vmatpush1.msra.mxu0 %v1619
        %1659 = vmatprep.subr.mxu0 %v1624
        %1660 = vmatpush1.msra.mxu0 %v1623
        %1661 = vmatprep.subr.mxu0 %v1628
        %1662 = vmatpush1.msra.mxu0 %v1627
        %1663 = vmatprep.subr.mxu0 0.0
        %1664 = vmatpush1.msra.mxu0 0.0
        %1665 = vmatprep.subr.mxu0 0.0
        %1666 = vmatpush1.msra.mxu0 0.0
        %1667 = vmatprep.subr.mxu0 0.0
        %1668 = vmatpush1.msra.mxu0 0.0
        %1669 = vmatprep.subr.mxu0 0.0
        %1670 = vmatpush1.msra.mxu0 0.0
        %1671 = vmatprep.subr.mxu0 0.0
        %1672 = vmatpush1.msra.mxu0 0.0
        %1673 = vmatprep.subr.mxu0 0.0
        %1674 = vmatpush1.msra.mxu0 0.0
        %1675 = vmatprep.subr.mxu0 0.0
        %1676 = vmatpush1.msra.mxu0 0.0
        %1677 = vmatprep.subr.mxu0 0.0
        %1678 = vmatpush1.msra.mxu0 0.0
        %1679 = vmatprep.subr.mxu0 0.0
        %1680 = vmatpush1.msra.mxu0 0.0
        %1681 = vmatprep.subr.mxu0 0.0
        %1682 = vmatpush1.msra.mxu0 0.0
        %1683 = vmatprep.subr.mxu0 0.0
        %1684 = vmatpush1.msra.mxu0 0.0
        %1685 = vmatprep.subr.mxu0 0.0
        %1686 = vmatpush1.msra.mxu0 0.0
        %1687 = vmatprep.subr.mxu0 0.0
        %1688 = vmatpush1.msra.mxu0 0.0
        %1689 = vmatprep.subr.mxu0 0.0
        %1690 = vmatpush1.msra.mxu0 0.0
        %1691 = vmatprep.subr.mxu0 0.0
        %1692 = vmatpush1.msra.mxu0 0.0
        %1693 = vmatprep.subr.mxu0 0.0
        %1694 = vmatpush1.msra.mxu0 0.0
        %1695 = vmatprep.mubr.f32.mxu0 0.0
        %1696 = vmatmul.mubr.f32.gmra.mrb[0].mxu0 %v1559
        %v1697 = vpop.f32.mrb[0].mxu0
        %v1698 = vadd.f32 0.0, %v1697
        %v1699 = vpop.f32.mrb[0].mxu0
        %v1700 = vadd.f32 0.0, %v1699
        %1701 = vdwg.mxu0
        %1702 = vmatprep.subr.mxu0 %v1570
        %1703 = vmatpush1.msra.mxu0 %v1569
        %1704 = vmatprep.subr.mxu0 %v1574
        %1705 = vmatpush1.msra.mxu0 %v1573
        %1706 = vmatprep.subr.mxu0 %v1578
        %1707 = vmatpush1.msra.mxu0 %v1577
        %1708 = vmatprep.subr.mxu0 %v1582
        %1709 = vmatpush1.msra.mxu0 %v1581
        %1710 = vmatprep.subr.mxu0 %v1586
        %1711 = vmatpush1.msra.mxu0 %v1585
        %1712 = vmatprep.subr.mxu0 %v1590
        %1713 = vmatpush1.msra.mxu0 %v1589
        %1714 = vmatprep.subr.mxu0 %v1594
        %1715 = vmatpush1.msra.mxu0 %v1593
        %1716 = vmatprep.subr.mxu0 %v1598
        %1717 = vmatpush1.msra.mxu0 %v1597
        %1718 = vmatprep.subr.mxu0 %v1602
        %1719 = vmatpush1.msra.mxu0 %v1601
        %1720 = vmatprep.subr.mxu0 %v1606
        %1721 = vmatpush1.msra.mxu0 %v1605
        %1722 = vmatprep.subr.mxu0 %v1610
        %1723 = vmatpush1.msra.mxu0 %v1609
        %1724 = vmatprep.subr.mxu0 %v1614
        %1725 = vmatpush1.msra.mxu0 %v1613
        %1726 = vmatprep.subr.mxu0 %v1618
        %1727 = vmatpush1.msra.mxu0 %v1617
        %1728 = vmatprep.subr.mxu0 %v1622
        %1729 = vmatpush1.msra.mxu0 %v1621
        %1730 = vmatprep.subr.mxu0 %v1626
        %1731 = vmatpush1.msra.mxu0 %v1625
        %1732 = vmatprep.subr.mxu0 %v1630
        %1733 = vmatpush1.msra.mxu0 %v1629
        %1734 = vmatprep.subr.mxu0 0.0
        %1735 = vmatpush1.msra.mxu0 0.0
        %1736 = vmatprep.subr.mxu0 0.0
        %1737 = vmatpush1.msra.mxu0 0.0
        %1738 = vmatprep.subr.mxu0 0.0
        %1739 = vmatpush1.msra.mxu0 0.0
        %1740 = vmatprep.subr.mxu0 0.0
        %1741 = vmatpush1.msra.mxu0 0.0
        %1742 = vmatprep.subr.mxu0 0.0
        %1743 = vmatpush1.msra.mxu0 0.0
        %1744 = vmatprep.subr.mxu0 0.0
        %1745 = vmatpush1.msra.mxu0 0.0
        %1746 = vmatprep.subr.mxu0 0.0
        %1747 = vmatpush1.msra.mxu0 0.0
        %1748 = vmatprep.subr.mxu0 0.0
        %1749 = vmatpush1.msra.mxu0 0.0
        %1750 = vmatprep.subr.mxu0 0.0
        %1751 = vmatpush1.msra.mxu0 0.0
        %1752 = vmatprep.subr.mxu0 0.0
        %1753 = vmatpush1.msra.mxu0 0.0
        %1754 = vmatprep.subr.mxu0 0.0
        %1755 = vmatpush1.msra.mxu0 0.0
        %1756 = vmatprep.subr.mxu0 0.0
        %1757 = vmatpush1.msra.mxu0 0.0
        %1758 = vmatprep.subr.mxu0 0.0
        %1759 = vmatpush1.msra.mxu0 0.0
        %1760 = vmatprep.subr.mxu0 0.0
        %1761 = vmatpush1.msra.mxu0 0.0
        %1762 = vmatprep.subr.mxu0 0.0
        %1763 = vmatpush1.msra.mxu0 0.0
        %1764 = vmatprep.subr.mxu0 0.0
        %1765 = vmatpush1.msra.mxu0 0.0
        %1766 = vmatprep.mubr.f32.mxu0 0.0
        %1767 = vmatmul.mubr.f32.gmra.mrb[0].mxu0 %v1559
        %v1768 = vpop.f32.mrb[0].mxu0
        %v1769 = vadd.f32 0.0, %v1768
        %v1770 = vpop.f32.mrb[0].mxu0
        %v1771 = vadd.f32 0.0, %v1770
        %1772 = vdwg.mxu0
        %v1773 = vadd.f32 %v1563, %v1698
        %v1774 = vadd.f32 %v1564, %v1700
        %v1775 = vadd.f32 %v1565, %v1769
        %v1776 = vadd.f32 %v1566, %v1771
        %v1777 = vxor.u32 %v1773, 2147483648
        %v1778 = vmul.f32 %v1777, 1.442695
        %v1779 = vpow.pop %v1778
        %v1780 = vadd.f32 %v1779, 1.0
        %v1781 = vrcp.pop %v1780
        %v1782 = vmul.f32 1.0, %v1781
        %v1783 = vxor.u32 %v1774, 2147483648
        %v1784 = vmul.f32 %v1783, 1.442695
        %v1785 = vpow.pop %v1784
        %v1786 = vadd.f32 %v1785, 1.0
        %v1787 = vrcp.pop %v1786
        %v1788 = vmul.f32 1.0, %v1787
        %v1789 = vtanh.pop %v1775
        %v1790 = vxor.u32 %v1776, 2147483648
        %v1791 = vmul.f32 %v1790, 1.442695
        %v1792 = vpow.pop %v1791
        %v1793 = vadd.f32 %v1792, 1.0
        %v1794 = vrcp.pop %v1793
        %v1795 = vmul.f32 1.0, %v1794
        %v1796 = vmul.f32 %v1788, %v1557
        %v1797 = vmul.f32 %v1782, %v1789
        %v1798 = vadd.f32 %v1796, %v1797
        %v1799 = vtanh.pop %v1798
        %v1800 = vmul.f32 %v1795, %v1799
        %s1801 = scalar_lea.vmem [#allocation2], 40
        %1802 = vst [vmem:[%s1801] sm:$0xff] %v1800
        %v1803 = vld [vmem:[#allocation2] sm:$0xff]
        %v1804 = vld [vmem:[#allocation2 + $0x8] sm:$0xff]
        %v1805 = vld [vmem:[#allocation2 + $0x10] sm:$0xff]
        %v1806 = vld [vmem:[#allocation2 + $0x18] sm:$0xff]
        %v1807 = vld [vmem:[#allocation2 + $0x20] sm:$0xff]
        %v1808 = vld [vmem:[#allocation2 + $0x28] sm:$0xff]
        %v1809 = vld [vmem:[#allocation4] sm:$0xff]
        %v1810 = vld [vmem:[#allocation4 + $0x8] sm:$0xff]
        %v1811 = vld [vmem:[#allocation4 + $0x10] sm:$0xff]
        %v1812 = vld [vmem:[#allocation4 + $0x18] sm:$0xff]
        %v1813 = vld [vmem:[#allocation4 + $0x20] sm:$0xff]
        %v1814 = vld [vmem:[#allocation4 + $0x28] sm:$0xff]
        %v1815 = vld [vmem:[#allocation4 + $0x30] sm:$0xff]
        %v1816 = vld [vmem:[#allocation4 + $0x38] sm:$0xff]
        %v1817 = vld [vmem:[#allocation4 + $0x40] sm:$0xff]
        %v1818 = vld [vmem:[#allocation4 + $0x48] sm:$0xff]
        %v1819 = vld [vmem:[#allocation4 + $0x50] sm:$0xff]
        %v1820 = vld [vmem:[#allocation4 + $0x58] sm:$0xff]
        %v1821 = vld [vmem:[#allocation4 + $0x60] sm:$0xff]
        %v1822 = vld [vmem:[#allocation4 + $0x68] sm:$0xff]
        %v1823 = vld [vmem:[#allocation4 + $0x70] sm:$0xff]
        %v1824 = vld [vmem:[#allocation4 + $0x78] sm:$0xff]
        %1825 = vmatprep.subr.mxu0 0.0
        %1826 = vmatpush1.msra.mxu0 %v1809
        %1827 = vmatprep.subr.mxu0 0.0
        %1828 = vmatpush1.msra.mxu0 %v1810
        %1829 = vmatprep.subr.mxu0 0.0
        %1830 = vmatpush1.msra.mxu0 %v1811
        %1831 = vmatprep.subr.mxu0 0.0
        %1832 = vmatpush1.msra.mxu0 %v1812
        %1833 = vmatprep.subr.mxu0 0.0
        %1834 = vmatpush1.msra.mxu0 %v1813
        %1835 = vmatprep.subr.mxu0 0.0
        %1836 = vmatpush1.msra.mxu0 %v1814
        %1837 = vmatprep.subr.mxu0 0.0
        %1838 = vmatpush1.msra.mxu0 %v1815
        %1839 = vmatprep.subr.mxu0 0.0
        %1840 = vmatpush1.msra.mxu0 %v1816
        %1841 = vmatprep.subr.mxu0 0.0
        %1842 = vmatpush1.msra.mxu0 %v1817
        %1843 = vmatprep.subr.mxu0 0.0
        %1844 = vmatpush1.msra.mxu0 %v1818
        %1845 = vmatprep.subr.mxu0 0.0
        %1846 = vmatpush1.msra.mxu0 %v1819
        %1847 = vmatprep.subr.mxu0 0.0
        %1848 = vmatpush1.msra.mxu0 %v1820
        %1849 = vmatprep.subr.mxu0 0.0
        %1850 = vmatpush1.msra.mxu0 %v1821
        %1851 = vmatprep.subr.mxu0 0.0
        %1852 = vmatpush1.msra.mxu0 %v1822
        %1853 = vmatprep.subr.mxu0 0.0
        %1854 = vmatpush1.msra.mxu0 %v1823
        %1855 = vmatprep.subr.mxu0 0.0
        %1856 = vmatpush1.msra.mxu0 %v1824
        %1857 = vmatprep.subr.mxu0 0.0
        %1858 = vmatpush1.msra.mxu0 0.0
        %1859 = vmatprep.subr.mxu0 0.0
        %1860 = vmatpush1.msra.mxu0 0.0
        %1861 = vmatprep.subr.mxu0 0.0
        %1862 = vmatpush1.msra.mxu0 0.0
        %1863 = vmatprep.subr.mxu0 0.0
        %1864 = vmatpush1.msra.mxu0 0.0
        %1865 = vmatprep.subr.mxu0 0.0
        %1866 = vmatpush1.msra.mxu0 0.0
        %1867 = vmatprep.subr.mxu0 0.0
        %1868 = vmatpush1.msra.mxu0 0.0
        %1869 = vmatprep.subr.mxu0 0.0
        %1870 = vmatpush1.msra.mxu0 0.0
        %1871 = vmatprep.subr.mxu0 0.0
        %1872 = vmatpush1.msra.mxu0 0.0
        %1873 = vmatprep.subr.mxu0 0.0
        %1874 = vmatpush1.msra.mxu0 0.0
        %1875 = vmatprep.subr.mxu0 0.0
        %1876 = vmatpush1.msra.mxu0 0.0
        %1877 = vmatprep.subr.mxu0 0.0
        %1878 = vmatpush1.msra.mxu0 0.0
        %1879 = vmatprep.subr.mxu0 0.0
        %1880 = vmatpush1.msra.mxu0 0.0
        %1881 = vmatprep.subr.mxu0 0.0
        %1882 = vmatpush1.msra.mxu0 0.0
        %1883 = vmatprep.subr.mxu0 0.0
        %1884 = vmatpush1.msra.mxu0 0.0
        %1885 = vmatprep.subr.mxu0 0.0
        %1886 = vmatpush1.msra.mxu0 0.0
        %1887 = vmatprep.subr.mxu0 0.0
        %1888 = vmatpush1.msra.mxu0 0.0
        %1889 = vmatprep.mubr.f32.mxu0 0.0
        %1890 = vmatmul.mubr.f32.gmra.mrb[0].mxu0 %v1803
        %v1891 = vpop.f32.mrb[0].mxu0
        %v1892 = vadd.f32 0.0, %v1891
        %v1893 = vpop.f32.mrb[0].mxu0
        %1894 = vmatprep.mubr.f32.mxu0 0.0
        %1895 = vmatmul.mubr.f32.gmra.mrb[0].mxu0 %v1804
        %v1896 = vpop.f32.mrb[0].mxu0
        %v1897 = vadd.f32 0.0, %v1896
        %v1898 = vpop.f32.mrb[0].mxu0
        %1899 = vmatprep.mubr.f32.mxu0 0.0
        %1900 = vmatmul.mubr.f32.gmra.mrb[0].mxu0 %v1805
        %v1901 = vpop.f32.mrb[0].mxu0
        %v1902 = vadd.f32 0.0, %v1901
        %v1903 = vpop.f32.mrb[0].mxu0
        %1904 = vmatprep.mubr.f32.mxu0 0.0
        %1905 = vmatmul.mubr.f32.gmra.mrb[0].mxu0 %v1806
        %v1906 = vpop.f32.mrb[0].mxu0
        %v1907 = vadd.f32 0.0, %v1906
        %v1908 = vpop.f32.mrb[0].mxu0
        %1909 = vmatprep.mubr.f32.mxu0 0.0
        %1910 = vmatmul.mubr.f32.gmra.mrb[0].mxu0 %v1807
        %v1911 = vpop.f32.mrb[0].mxu0
        %v1912 = vadd.f32 0.0, %v1911
        %v1913 = vpop.f32.mrb[0].mxu0
        %1914 = vmatprep.mubr.f32.mxu0 0.0
        %1915 = vmatmul.mubr.f32.gmra.mrb[0].mxu0 %v1808
        %v1916 = vpop.f32.mrb[0].mxu0
        %v1917 = vadd.f32 0.0, %v1916
        %v1918 = vpop.f32.mrb[0].mxu0
        %1919 = vdwg.mxu0
        %v1920 = vld [vmem:[%s358] sm:$0xff]
        %v1921 = vadd.f32 %v1892, %v1920
        %v1922 = vadd.f32 %v1897, %v1920
        %v1923 = vadd.f32 %v1902, %v1920
        %v1924 = vadd.f32 %v1907, %v1920
        %v1925 = vadd.f32 %v1912, %v1920
        %v1926 = vadd.f32 %v1917, %v1920
        %v1927 = vmax.f32 %v1921, 0.0
        %v1928 = vmax.f32 %v1922, 0.0
        %v1929 = vmax.f32 %v1923, 0.0
        %v1930 = vmax.f32 %v1924, 0.0
        %v1931 = vmax.f32 %v1925, 0.0
        %v1932 = vmax.f32 %v1926, 0.0
        %v1933 = vld [vmem:[#allocation6] sm:$0xff]
        %v1934 = vld [vmem:[#allocation6 + $0x8] sm:$0xff]
        %v1935 = vld [vmem:[#allocation6 + $0x10] sm:$0xff]
        %v1936 = vld [vmem:[#allocation6 + $0x18] sm:$0xff]
        %v1937 = vld [vmem:[#allocation6 + $0x20] sm:$0xff]
        %v1938 = vld [vmem:[#allocation6 + $0x28] sm:$0xff]
        %v1939 = vld [vmem:[#allocation6 + $0x30] sm:$0xff]
        %v1940 = vld [vmem:[#allocation6 + $0x38] sm:$0xff]
        %v1941 = vld [vmem:[#allocation6 + $0x40] sm:$0xff]
        %v1942 = vld [vmem:[#allocation6 + $0x48] sm:$0xff]
        %v1943 = vld [vmem:[#allocation6 + $0x50] sm:$0xff]
        %v1944 = vld [vmem:[#allocation6 + $0x58] sm:$0xff]
        %v1945 = vld [vmem:[#allocation6 + $0x60] sm:$0xff]
        %v1946 = vld [vmem:[#allocation6 + $0x68] sm:$0xff]
        %v1947 = vld [vmem:[#allocation6 + $0x70] sm:$0xff]
        %v1948 = vld [vmem:[#allocation6 + $0x78] sm:$0xff]
        %v1949 = vld [vmem:[%s5] sm:$0x1]
        %v1951 = vlaneseq
        %v1952 = vshrl.u32 %v1951, 7
        %v1953 = vsub.s32 0, %v1952
        %v1954 = vrot.slane %v1949, %v1953
        %1956 = vmatprep.subr.mxu0 0.0
        %1957 = vmatpush1.msra.mxu0 %v1933
        %1958 = vmatprep.subr.mxu0 0.0
        %1959 = vmatpush1.msra.mxu0 %v1934
        %1960 = vmatprep.subr.mxu0 0.0
        %1961 = vmatpush1.msra.mxu0 %v1935
        %1962 = vmatprep.subr.mxu0 0.0
        %1963 = vmatpush1.msra.mxu0 %v1936
        %1964 = vmatprep.subr.mxu0 0.0
        %1965 = vmatpush1.msra.mxu0 %v1937
        %1966 = vmatprep.subr.mxu0 0.0
        %1967 = vmatpush1.msra.mxu0 %v1938
        %1968 = vmatprep.subr.mxu0 0.0
        %1969 = vmatpush1.msra.mxu0 %v1939
        %1970 = vmatprep.subr.mxu0 0.0
        %1971 = vmatpush1.msra.mxu0 %v1940
        %1972 = vmatprep.subr.mxu0 0.0
        %1973 = vmatpush1.msra.mxu0 %v1941
        %1974 = vmatprep.subr.mxu0 0.0
        %1975 = vmatpush1.msra.mxu0 %v1942
        %1976 = vmatprep.subr.mxu0 0.0
        %1977 = vmatpush1.msra.mxu0 %v1943
        %1978 = vmatprep.subr.mxu0 0.0
        %1979 = vmatpush1.msra.mxu0 %v1944
        %1980 = vmatprep.subr.mxu0 0.0
        %1981 = vmatpush1.msra.mxu0 %v1945
        %1982 = vmatprep.subr.mxu0 0.0
        %1983 = vmatpush1.msra.mxu0 %v1946
        %1984 = vmatprep.subr.mxu0 0.0
        %1985 = vmatpush1.msra.mxu0 %v1947
        %1986 = vmatprep.subr.mxu0 0.0
        %1987 = vmatpush1.msra.mxu0 %v1948
        %1988 = vmatprep.subr.mxu0 0.0
        %1989 = vmatpush1.msra.mxu0 0.0
        %1990 = vmatprep.subr.mxu0 0.0
        %1991 = vmatpush1.msra.mxu0 0.0
        %1992 = vmatprep.subr.mxu0 0.0
        %1993 = vmatpush1.msra.mxu0 0.0
        %1994 = vmatprep.subr.mxu0 0.0
        %1995 = vmatpush1.msra.mxu0 0.0
        %1996 = vmatprep.subr.mxu0 0.0
        %1997 = vmatpush1.msra.mxu0 0.0
        %1998 = vmatprep.subr.mxu0 0.0
        %1999 = vmatpush1.msra.mxu0 0.0
        %2000 = vmatprep.subr.mxu0 0.0
        %2001 = vmatpush1.msra.mxu0 0.0
        %2002 = vmatprep.subr.mxu0 0.0
        %2003 = vmatpush1.msra.mxu0 0.0
        %2004 = vmatprep.subr.mxu0 0.0
        %2005 = vmatpush1.msra.mxu0 0.0
        %2006 = vmatprep.subr.mxu0 0.0
        %2007 = vmatpush1.msra.mxu0 0.0
        %2008 = vmatprep.subr.mxu0 0.0
        %2009 = vmatpush1.msra.mxu0 0.0
        %2010 = vmatprep.subr.mxu0 0.0
        %2011 = vmatpush1.msra.mxu0 0.0
        %2012 = vmatprep.subr.mxu0 0.0
        %2013 = vmatpush1.msra.mxu0 0.0
        %2014 = vmatprep.subr.mxu0 0.0
        %2015 = vmatpush1.msra.mxu0 0.0
        %2016 = vmatprep.subr.mxu0 0.0
        %2017 = vmatpush1.msra.mxu0 0.0
        %2018 = vmatprep.subr.mxu0 0.0
        %2019 = vmatpush1.msra.mxu0 0.0
        %2020 = vmatprep.mubr.f32.mxu0 0.0
        %2021 = vmatmul.mubr.f32.gmra.mrb[0].mxu0 %v1927
        %v2022 = vpop.f32.mrb[0].mxu0
        %v2023 = vadd.f32 %v1954, %v2022
        %v2024 = vpop.f32.mrb[0].mxu0
        %2025 = vmatprep.mubr.f32.mxu0 0.0
        %2026 = vmatmul.mubr.f32.gmra.mrb[0].mxu0 %v1928
        %v2027 = vpop.f32.mrb[0].mxu0
        %v2028 = vadd.f32 %v1954, %v2027
        %v2029 = vpop.f32.mrb[0].mxu0
        %2030 = vmatprep.mubr.f32.mxu0 0.0
        %2031 = vmatmul.mubr.f32.gmra.mrb[0].mxu0 %v1929
        %v2032 = vpop.f32.mrb[0].mxu0
        %v2033 = vadd.f32 %v1954, %v2032
        %v2034 = vpop.f32.mrb[0].mxu0
        %2035 = vmatprep.mubr.f32.mxu0 0.0
        %2036 = vmatmul.mubr.f32.gmra.mrb[0].mxu0 %v1930
        %v2037 = vpop.f32.mrb[0].mxu0
        %v2038 = vadd.f32 %v1954, %v2037
        %v2039 = vpop.f32.mrb[0].mxu0
        %2040 = vmatprep.mubr.f32.mxu0 0.0
        %2041 = vmatmul.mubr.f32.gmra.mrb[0].mxu0 %v1931
        %v2042 = vpop.f32.mrb[0].mxu0
        %v2043 = vadd.f32 %v1954, %v2042
        %v2044 = vpop.f32.mrb[0].mxu0
        %2045 = vmatprep.mubr.f32.mxu0 0.0
        %2046 = vmatmul.mubr.f32.gmra.mrb[0].mxu0 %v1932
        %v2047 = vpop.f32.mrb[0].mxu0
        %v2048 = vadd.f32 %v1954, %v2047
        %v2049 = vpop.f32.mrb[0].mxu0
        %2050 = vdwg.mxu0
        %v2051 = vadd.f32 %v1927, %v2023
        %v2052 = vadd.f32 %v1928, %v2028
        %v2053 = vadd.f32 %v1929, %v2033
        %v2054 = vadd.f32 %v1930, %v2038
        %v2055 = vadd.f32 %v1931, %v2043
        %v2056 = vadd.f32 %v1932, %v2048
        %2057 = vst [vmem:[%s354] sm:$0xff] %v2051
        %2058 = vst [vmem:[%s354 + $0x8] sm:$0xff] %v2052
        %2059 = vst [vmem:[%s354 + $0x10] sm:$0xff] %v2053
        %2060 = vst [vmem:[%s354 + $0x18] sm:$0xff] %v2054
        %2061 = vst [vmem:[%s354 + $0x20] sm:$0xff] %v2055
        %2062 = vst [vmem:[%s354 + $0x28] sm:$0xff] %v2056
        %s2063 = sand.u32 %s163, 1
        %s2064 = sand.u32 %s163, 1
        %s2065 = smul.addr %s2064, 48
        %s2066 = scalar_lea.vmem [#allocation8], %s2065
        // Predicated region
        $region76: #{bbox_lstm_forward.1} parent=62 // pred_check
          %p2067 = pneg %p173
        $region77: #{bbox_lstm_forward.1} parent=62 // pred_check_branch
          %2069 = sbr.rel (%p2067) target = $region79
        $region78: #{bbox_lstm_forward.1} parent=62 // pred_region
          %s2070 = smul.addr %s19, 8
          %s2071 = scalar_lea.vmem %s6, %s2070
          // Predicated region
          $region80: #{bbox_lstm_forward.1} parent=78 // pred_check
            _
          $region81: #{bbox_lstm_forward.1} parent=78 // pred_check_branch
            %2073 = sbr.rel (0) target = $region83
          $region82: #{bbox_lstm_forward.1} parent=78 // pred_region
            // Predicated region
            $region84: #{bbox_lstm_forward.1} parent=82 // pred_check
              _
            $region85: #{bbox_lstm_forward.1} parent=82 // pred_check_branch
              %2075 = sbr.rel (0) target = $region87
            $region86: #{bbox_lstm_forward.1} parent=82 // pred_region
              // Predicated region
              $region99: #{bbox_lstm_forward.1} parent=86 // pred_check
                _
              $region100: #{bbox_lstm_forward.1} parent=86 // pred_check_branch
                %2100 = sbr.rel (0) target = $region102
              $region101: #{bbox_lstm_forward.1} parent=86 // pred_region
                loop: start=0, step=1, limit=1
                $region103: #{bbox_lstm_forward.1} parent=101 // loop_pre_header
                  _
                $region104: #{bbox_lstm_forward.1} parent=101 // loop_header
                  %s2102 = sphi 0, %s2106
                  %p2103 = scmp.ge.s32.totalorder %s2102, 1
                  %s2107 = sphi %s2066, %s2066
                  %s2108 = sphi %s2071, %s2071
                $region105: #{bbox_lstm_forward.1} parent=101 // loop_header_branch
                  %2105 = sbr.rel (%p2103) target = $region109
                $region106: #{bbox_lstm_forward.1} parent=101 // loop_body
                  %v2109 = vld [vmem:[%s2107] sm:$0xff]
                  %2110 = vst [vmem:[%s2108] sm:$0xff] %v2109
                  %v2111 = vld [vmem:[%s2107 + $0x8] sm:$0xff]
                  %2112 = vst [vmem:[%s2108 + $0x10] sm:$0xff] %v2111
                  %v2113 = vld [vmem:[%s2107 + $0x10] sm:$0xff]
                  %2114 = vst [vmem:[%s2108 + $0x20] sm:$0xff] %v2113
                  %v2115 = vld [vmem:[%s2107 + $0x18] sm:$0xff]
                  %2116 = vst [vmem:[%s2108 + $0x30] sm:$0xff] %v2115
                  %v2117 = vld [vmem:[%s2107 + $0x20] sm:$0xff]
                  %2118 = vst [vmem:[%s2108 + $0x40] sm:$0xff] %v2117
                  %v2119 = vld [vmem:[%s2107 + $0x28] sm:$0xff]
                  %2120 = vst [vmem:[%s2108 + $0x50] sm:$0xff] %v2119
                $region107: #{bbox_lstm_forward.1} parent=101 // loop_footer
                  %s2106 = sadd.s32 1, %s2102
                $region108: #{bbox_lstm_forward.1} parent=101 // loop_footer_branch
                  %2101 = sbr.rel target = $region104
                $region109: #{bbox_lstm_forward.1} parent=101 // loop_exit
                  _
              $region102: #{bbox_lstm_forward.1} parent=86 // pred_fallthru
                _
              // Predicated region
              $region110: #{bbox_lstm_forward.1} parent=86 // pred_check
                _
              $region111: #{bbox_lstm_forward.1} parent=86 // pred_check_branch
                %2122 = sbr.rel target = $region113
              $region112: #{bbox_lstm_forward.1} parent=86 // pred_region
                _
              $region113: #{bbox_lstm_forward.1} parent=86 // pred_fallthru
                _
            $region87: #{bbox_lstm_forward.1} parent=82 // pred_fallthru
              _
            // Predicated region
            $region88: #{bbox_lstm_forward.1} parent=82 // pred_check
              _
            $region89: #{bbox_lstm_forward.1} parent=82 // pred_check_branch
              %2077 = sbr.rel target = $region91
            $region90: #{bbox_lstm_forward.1} parent=82 // pred_region
              loop: start=0, step=1, limit=1
              $region92: #{bbox_lstm_forward.1} parent=90 // loop_pre_header
                _
              $region93: #{bbox_lstm_forward.1} parent=90 // loop_header
                %s2080 = sphi 0, %s2084
                %p2081 = scmp.ge.s32.totalorder %s2080, 1
                %s2085 = sphi %s2066, %s2066
                %s2086 = sphi %s2071, %s2071
              $region94: #{bbox_lstm_forward.1} parent=90 // loop_header_branch
                %2083 = sbr.rel (%p2081) target = $region98
              $region95: #{bbox_lstm_forward.1} parent=90 // loop_body
                %v2087 = vld [vmem:[%s2085] sm:$0xff]
                %2088 = vst [vmem:[%s2086] sm:$0xff] %v2087
                %v2089 = vld [vmem:[%s2085 + $0x8] sm:$0xff]
                %2090 = vst [vmem:[%s2086 + $0x10] sm:$0xff] %v2089
                %v2091 = vld [vmem:[%s2085 + $0x10] sm:$0xff]
                %2092 = vst [vmem:[%s2086 + $0x20] sm:$0xff] %v2091
                %v2093 = vld [vmem:[%s2085 + $0x18] sm:$0xff]
                %2094 = vst [vmem:[%s2086 + $0x30] sm:$0xff] %v2093
                %v2095 = vld [vmem:[%s2085 + $0x20] sm:$0xff]
                %2096 = vst [vmem:[%s2086 + $0x40] sm:$0xff] %v2095
                %v2097 = vld [vmem:[%s2085 + $0x28] sm:$0xff]
                %2098 = vst [vmem:[%s2086 + $0x50] sm:$0xff] %v2097
              $region96: #{bbox_lstm_forward.1} parent=90 // loop_footer
                %s2084 = sadd.s32 1, %s2080
              $region97: #{bbox_lstm_forward.1} parent=90 // loop_footer_branch
                %2079 = sbr.rel target = $region93
              $region98: #{bbox_lstm_forward.1} parent=90 // loop_exit
                _
            $region91: #{bbox_lstm_forward.1} parent=82 // pred_fallthru
              _
          $region83: #{bbox_lstm_forward.1} parent=78 // pred_fallthru
            _
          %2123 = vnop
        $region79: #{bbox_lstm_forward.1} parent=62 // pred_fallthru
          _
      $region63: #{bbox_lstm_forward.1} parent=5 // pred_fallthru
        _
      %p2124 = scmp.le.s32.totalorder 2, %s14
      // Predicated region
      $region114: #{bbox_lstm_forward.1} parent=5 // pred_check
        %p2125 = pneg %p2124
      $region115: #{bbox_lstm_forward.1} parent=5 // pred_check_branch
        %2127 = sbr.rel (%p2125) target = $region117
      $region116: #{bbox_lstm_forward.1} parent=5 // pred_region
        %s2128 = ssub.s32 %s14, 2
        // Predicated region
        $region118: #{bbox_lstm_forward.1} parent=116 // pred_check
          %p2129 = pneg %p179
        $region119: #{bbox_lstm_forward.1} parent=116 // pred_check_branch
          %2131 = sbr.rel (%p2129) target = $region121
        $region120: #{bbox_lstm_forward.1} parent=116 // pred_region
          %s2132 = sand.u32 %s164, 1
          %s2133 = sand.u32 %s164, 1
          %s2134 = smul.addr %s2133, 48
          %s2135 = scalar_lea.vmem [#allocation8], %s2134
        $region121: #{bbox_lstm_forward.1} parent=116 // pred_fallthru
          _
      $region117: #{bbox_lstm_forward.1} parent=5 // pred_fallthru
        _
    $region6: #{bbox_lstm_forward.1} parent=1 // loop_footer
      %s18 = sadd.s32 1, %s14
    $region7: #{bbox_lstm_forward.1} parent=1 // loop_footer_branch
      %13 = sbr.rel target = $region3
    $region8: #{bbox_lstm_forward.1} parent=1 // loop_exit
      _
    %2136 = vsyncpa [#allocation5], 1
    %s2137 = scalar_lea.sflag [#allocation5], 1
    %2138 = vsyncpa %s2137, 1
    %2139 = vsyncpa [#allocation7], 1

</llo_original>
